<compile_context>
chip_gen: v5e
topology: v5e:2x2
jax: 0.10.0
libtpu: 0.0.40
codegen_flags: <defaults>
</compile_context>

<pallas_src>
import functools

import jax
import jax.numpy as jnp
from jax import lax
from jax.experimental import pallas as pl
from jax.experimental.pallas import tpu as pltpu


def _round_up(x, m):
    return (x + m - 1) // m * m


def _largest_div(n, quantum, cap):
    """Largest multiple of `quantum` that divides n and is <= cap (None if none)."""
    best = None
    d = quantum
    while d <= cap:
        if n % d == 0:
            best = d
        d += quantum
    return best


def _tpu_vmem_bytes():
    try:
        info = pltpu.get_tpu_info()
        v = getattr(info, "vmem_capacity_bytes", None)
        if v:
            return int(v)
    except Exception:
        pass
    return 64 * 1024 * 1024  # conservative default (v7x per-TensorCore VMEM)


_VMEM_PHYS = _tpu_vmem_bytes()
# Per-kernel double-buffered working-set target and Mosaic scoped-VMEM ceiling,
# derived from the actual generation (128 MiB on v5e/v6e, 64 MiB on v7x).
_VMEM_BUDGET = min(max(_VMEM_PHYS // 5, 12 * 1024 * 1024), 32 * 1024 * 1024)
_VMEM_LIMIT = max(32 * 1024 * 1024, min(_VMEM_PHYS // 2, 64 * 1024 * 1024))


def _choose_m_tile(M):
    """Row tile / padded row count.  Prefers a divisor of M (no padding); large
    non-divisible M falls back to a 512-row tile (vs 256 before)."""
    tm = _largest_div(M, 16, 1024)
    if tm is not None and tm >= 256:
        return tm, M
    if M <= 1024:
        tm = _round_up(M, 16)
        return tm, tm
    return 512, _round_up(M, 512)


# ---------------------------------------------------------------------------
# Pallas kernel: tiled MXU matmul, bf16 operands / f32 accumulation, fused
# epilogue: + bias, + optional residual, optional ReLU.
# ---------------------------------------------------------------------------
def _matmul_kernel(*refs, relu, has_res, single_k):
    a_ref, b_ref, bias_ref = refs[0], refs[1], refs[2]
    idx = 3
    if has_res:
        res_ref = refs[idx]
        idx += 1
    o_ref = refs[idx]
    acc_ref = None if single_k else refs[idx + 1]

    part = jnp.dot(a_ref[...].astype(jnp.bfloat16),
                   b_ref[...].astype(jnp.bfloat16),
                   preferred_element_type=jnp.float32)

    def _epilogue(acc):
        r = acc + bias_ref[...].astype(jnp.float32)
        if has_res:
            r = r + res_ref[...].astype(jnp.float32)
        if relu:
            r = jnp.maximum(r, 0.0)
        o_ref[...] = r.astype(o_ref.dtype)

    if single_k:
        _epilogue(part)
    else:
        @pl.when(pl.program_id(2) == 0)
        def _init():
            acc_ref[...] = jnp.zeros_like(acc_ref)

        acc_ref[...] += part

        @pl.when(pl.program_id(2) == pl.num_programs(2) - 1)
        def _finish():
            _epilogue(acc_ref[...])


@functools.partial(jax.jit, static_argnames=("relu", "out_dtype"))
def pallas_matmul(a, b, bias, residual=None, *, relu=False, out_dtype=jnp.float32):
    """relu?(a @ b + bias [+ residual]).  a:(M,K), b:(K,N) bf16, bias:(N,)."""
    M, K = a.shape
    N = b.shape[1]
    has_res = residual is not None

    # ---- N tiling: 256-aligned for the 256-deep MXU when possible, never pad N --
    if N % 256 == 0:
        tn = 256
    elif N % 128 == 0:
        tn = 128
    else:
        tn = N

    tm, Mp = _choose_m_tile(M)

    a_bytes = jnp.dtype(a.dtype).itemsize
    b_bytes = jnp.dtype(b.dtype).itemsize
    o_bytes = jnp.dtype(out_dtype).itemsize
    r_bytes = jnp.dtype(residual.dtype).itemsize if has_res else 0

    def _vmem(tk_):
        tk_eff = _round_up(tk_, 128)          # VMEM layout pads the lane dim
        use = 2 * tm * tk_eff * a_bytes + 2 * tk_eff * tn * b_bytes
        use += 2 * tm * tn * o_bytes + 2 * tn * 4
        if has_res:
            use += 2 * tm * tn * r_bytes
        return use

    # ---- K blocking: prefer ONE full-K block.  Full-dim blocks are exempt from
    # the (8,128) alignment rule, so K then needs NO padding (no jnp.pad copies
    # of A / b).  The nk>1 path below is a fallback (never hit by this net).
    if _vmem(K) <= _VMEM_BUDGET:
        tk, Kp = K, K
    else:
        Kp = _round_up(K, 128)
        tk = 128
        d = 128
        while d <= 8192:
            if Kp % d == 0 and _vmem(d) <= _VMEM_BUDGET:
                tk = d
            d += 128
    nk = Kp // tk
    single_k = nk == 1

    # ---- pad only when strictly needed (tiny / cold cases for this net) --------
    if Mp > M or Kp > K:
        a = jnp.pad(a, ((0, Mp - M), (0, Kp - K)))
    if Kp > K:
        b = jnp.pad(b, ((0, Kp - K), (0, 0)))
    if has_res and Mp > M:
        residual = jnp.pad(residual, ((0, Mp - M), (0, 0)))
    bias2 = bias.reshape(1, N)

    in_specs = [pl.BlockSpec((tm, tk), lambda i, j, k: (i, k)),
                pl.BlockSpec((tk, tn), lambda i, j, k: (k, j)),
                pl.BlockSpec((1, tn), lambda i, j, k: (0, j))]
    operands = [a, b, bias2]
    if has_res:
        # NOTE: with nk>1 the residual tile would be re-read every k step; all
        # residual layers in this net take the single-K path so it is moot.
        in_specs.append(pl.BlockSpec((tm, tn), lambda i, j, k: (i, j)))
        operands.append(residual)

    out = pl.pallas_call(
        functools.partial(_matmul_kernel, relu=relu, has_res=has_res,
                          single_k=single_k),
        out_shape=jax.ShapeDtypeStruct((Mp, N), out_dtype),
        grid_spec=pltpu.PrefetchScalarGridSpec(
            num_scalar_prefetch=0,
            grid=(Mp // tm, N // tn, nk),
            in_specs=in_specs,
            out_specs=pl.BlockSpec((tm, tn), lambda i, j, k: (i, j)),
            scratch_shapes=([] if single_k
                            else [pltpu.VMEM((tm, tn), jnp.float32)])),
        compiler_params=pltpu.CompilerParams(
            dimension_semantics=("parallel", "parallel", "arbitrary"),
            vmem_limit_bytes=_VMEM_LIMIT),
    )(*operands)
    if Mp > M:
        out = out[:M]
    return out


# ---------------------------------------------------------------------------
# Conv2d: 1x1 convs feed the matmul directly; k>1 convs build the patch matrix
# (im2col, XLA glue) directly at the final row-padded height and exact K width,
# then one fused matmul.
# ---------------------------------------------------------------------------
@functools.partial(jax.jit,
                   static_argnames=("ksize", "stride", "pad", "relu", "out_dtype"))
def conv2d(x, w_flat, bias, residual=None, *, ksize, stride, pad, relu=False,
           out_dtype=jnp.bfloat16):
    # x: (B,H,W,C) NHWC ; w_flat: (ksize*ksize*C, O) ordered (kh, kw, Cin)
    B, H, W, C = x.shape
    O = w_flat.shape[1]
    Ho = (H + 2 * pad - ksize) // stride + 1
    Wo = (W + 2 * pad - ksize) // stride + 1
    M = B * Ho * Wo

    if ksize == 1 and pad == 0:
        xs = x if stride == 1 else x[:, ::stride, ::stride, :]
        A = xs.reshape(M, C)
    else:
        # TODO(synk): fully tap-folded conv (no patch-matrix materialization) would
        # need element-offset / overlapping BlockSpec windows; im2col stays as XLA
        # glue.  The patch matrix is assembled once at the final row-padded height
        # and unpadded K width (single full-K matmul block), so no second pad/copy
        # pass ever touches A.
        _, Mp = _choose_m_tile(M)
        xp = jnp.pad(x, ((0, 0), (pad, pad), (pad, pad), (0, 0))) if pad else x
        taps = [xp[:, dh:dh + Ho * stride:stride,
                   dw:dw + Wo * stride:stride, :].reshape(M, C)
                for dh in range(ksize) for dw in range(ksize)]
        if Mp > M:
            taps = [jnp.pad(t, ((0, Mp - M), (0, 0))) for t in taps]
        A = jnp.concatenate(taps, axis=1)

    res2d = None if residual is None else residual.reshape(M, O)
    out = pallas_matmul(A, w_flat, bias, res2d, relu=relu, out_dtype=out_dtype)
    return out[:M].reshape(B, Ho, Wo, O)


# ---------------------------------------------------------------------------
# Pallas kernel: max-pool as an elementwise max over the k*k window taps.
# Taps and output are packed lane-dense as (B*Ho, Wo*C) rows so the STN pools
# (C=8/10) do not waste 120 of 128 lanes.  Optional fused ReLU.
# ---------------------------------------------------------------------------
def _maxpool_kernel(*refs, relu):
    o_ref = refs[-1]
    r = refs[0][...]
    for t_ref in refs[1:-1]:
        r = jnp.maximum(r, t_ref[...])
    if relu:
        r = jnp.maximum(r, 0.0)
    o_ref[...] = r


@functools.partial(jax.jit, static_argnames=("ksize", "stride", "pad", "relu"))
def maxpool2d(x, *, ksize, stride, pad, relu=False):
    B, H, W, C = x.shape
    neg = float(jnp.finfo(x.dtype).min)
    xp = (jnp.pad(x, ((0, 0), (pad, pad), (pad, pad), (0, 0)), constant_values=neg)
          if pad else x)
    Ho = (H + 2 * pad - ksize) // stride + 1
    Wo = (W + 2 * pad - ksize) // stride + 1
    R = B * Ho                       # rows in the lane-dense (B*Ho, Wo*C) packing
    L = Wo * C
    taps = [xp[:, dh:dh + Ho * stride:stride,
               dw:dw + Wo * stride:stride, :].reshape(R, L)
            for dh in range(ksize) for dw in range(ksize)]

    itemsize = jnp.dtype(x.dtype).itemsize
    per_row = (ksize * ksize + 1) * 2 * L * itemsize   # double-buffered taps + out
    cap = max(8, min(R, _VMEM_BUDGET // per_row))
    tr = _largest_div(R, 8, cap)
    if tr is None:                                     # R not a multiple of 8
        Rp = _round_up(R, 8)
        taps = [jnp.pad(t, ((0, Rp - R), (0, 0)), constant_values=neg)
                for t in taps]
        tr = 8
    else:
        Rp = R

    spec = pl.BlockSpec((tr, L), lambda i: (i, 0))
    out = pl.pallas_call(
        functools.partial(_maxpool_kernel, relu=relu),
        out_shape=jax.ShapeDtypeStruct((Rp, L), x.dtype),
        grid_spec=pltpu.PrefetchScalarGridSpec(
            num_scalar_prefetch=0, grid=(Rp // tr,),
            in_specs=[spec] * (ksize * ksize),
            out_specs=pl.BlockSpec((tr, L), lambda i: (i, 0))),
        compiler_params=pltpu.CompilerParams(
            dimension_semantics=("parallel",),
            vmem_limit_bytes=_VMEM_LIMIT),
    )(*taps)
    if Rp > R:
        out = out[:R]
    return out.reshape(B, Ho, Wo, C)


# ---------------------------------------------------------------------------
# Pallas kernel: global average pool (AdaptiveAvgPool2d((1,1))), f32 accumulate.
# ---------------------------------------------------------------------------
def _avgpool_kernel(x_ref, o_ref):
    o_ref[...] = jnp.mean(x_ref[...].astype(jnp.float32), axis=1)


@jax.jit
def global_avgpool(x):
    B, H, W, C = x.shape
    xf = x.reshape(B, H * W, C)
    return pl.pallas_call(
        _avgpool_kernel,
        out_shape=jax.ShapeDtypeStruct((B, C), jnp.float32),
        grid_spec=pltpu.PrefetchScalarGridSpec(
            num_scalar_prefetch=0, grid=(1,),
            in_specs=[pl.BlockSpec((B, H * W, C), lambda i: (0, 0, 0))],
            out_specs=pl.BlockSpec((B, C), lambda i: (0, 0))),
    )(xf)


# ---------------------------------------------------------------------------
# Pallas kernels: F.affine_grid + F.grid_sample (align_corners=False, bilinear,
# zero padding).  Kernel A computes un-normalized sample coords as a flat
# (B, 2, HW) slab; the 4-corner gather is JAX glue (bf16); Kernel B computes
# bilinear weights / OOB masks / blend over a full (C, HW) slab per image and
# writes the sampled image in bf16.
# ---------------------------------------------------------------------------
def _affine_grid_kernel(theta_ref, o_ref, *, H, W):
    b = pl.program_id(0)
    HWp = o_ref.shape[2]
    idx = lax.broadcasted_iota(jnp.int32, (1, HWp), 1).astype(jnp.float32)
    # flat index -> (row, col); exact in f32 since idx < 2^24 and the +0.5 offset
    # keeps the quotient strictly inside (h, h+1).
    hh = jnp.floor((idx + 0.5) * (1.0 / W))
    ww = idx - hh * W
    # base grid (align_corners=False): pixel centers mapped to [-1, 1]
    xn = (2.0 * ww + 1.0) / W - 1.0
    yn = (2.0 * hh + 1.0) / H - 1.0
    t00 = theta_ref[b, 0]; t01 = theta_ref[b, 1]; t02 = theta_ref[b, 2]
    t10 = theta_ref[b, 3]; t11 = theta_ref[b, 4]; t12 = theta_ref[b, 5]
    gx = t00 * xn + t01 * yn + t02
    gy = t10 * xn + t11 * yn + t12
    # grid_sample un-normalization (align_corners=False)
    o_ref[0, 0:1, :] = ((gx + 1.0) * W - 1.0) * 0.5
    o_ref[0, 1:2, :] = ((gy + 1.0) * H - 1.0) * 0.5


def _affine_grid_coords(theta, H, W):
    B = theta.shape[0]
    HWp = _round_up(H * W, 128)
    return pl.pallas_call(
        functools.partial(_affine_grid_kernel, H=H, W=W),
        out_shape=jax.ShapeDtypeStruct((B, 2, HWp), jnp.float32),
        grid_spec=pltpu.PrefetchScalarGridSpec(
            num_scalar_prefetch=0, grid=(B,),
            in_specs=[pl.BlockSpec(memory_space=pltpu.MemorySpace.SMEM)],
            out_specs=pl.BlockSpec((1, 2, HWp), lambda b: (b, 0, 0))),
    )(theta.reshape(B, 6))


def _grid_sample_kernel(c_ref, v00_ref, v01_ref, v10_ref, v11_ref, o_ref, *, H, W):
    ix = c_ref[0, 0:1, :]
    iy = c_ref[0, 1:2, :]
    ix0 = jnp.floor(ix)
    iy0 = jnp.floor(iy)
    fx = ix - ix0
    fy = iy - iy0
    vx0 = (ix0 >= 0.0) & (ix0 <= W - 1.0)
    vx1 = (ix0 + 1.0 >= 0.0) & (ix0 + 1.0 <= W - 1.0)
    vy0 = (iy0 >= 0.0) & (iy0 <= H - 1.0)
    vy1 = (iy0 + 1.0 >= 0.0) & (iy0 + 1.0 <= H - 1.0)
    w00 = jnp.where(vx0 & vy0, (1.0 - fx) * (1.0 - fy), 0.0)
    w01 = jnp.where(vx1 & vy0, fx * (1.0 - fy), 0.0)
    w10 = jnp.where(vx0 & vy1, (1.0 - fx) * fy, 0.0)
    w11 = jnp.where(vx1 & vy1, fx * fy, 0.0)
    r = (w00 * v00_ref[0].astype(jnp.float32) +
         w01 * v01_ref[0].astype(jnp.float32) +
         w10 * v10_ref[0].astype(jnp.float32) +
         w11 * v11_ref[0].astype(jnp.float32))
    o_ref[0] = r.astype(o_ref.dtype)


@jax.jit
def grid_sample_bilinear_nhwc(x_nchw, theta):
    """F.grid_sample(x, F.affine_grid(theta, x.size())) with align_corners=False,
    bilinear, zero padding.  Returns the sampled image in NHWC bf16 (the layout
    the downstream stem conv consumes)."""
    B, C, H, W = x_nchw.shape
    HW = H * W
    coords = _affine_grid_coords(theta, H, W)            # (B, 2, HWp) f32
    HWp = coords.shape[2]
    ix = coords[:, 0]
    iy = coords[:, 1]
    ix0 = jnp.floor(ix).astype(jnp.int32)
    iy0 = jnp.floor(iy).astype(jnp.int32)

    flat = x_nchw.astype(jnp.bfloat16).reshape(B, C, HW)

    # TODO(synk): the data-dependent 4-corner gather is done with XLA
    # take_along_axis (no clean rectangular-BlockSpec Pallas equivalent);
    # the bilinear weighting / masking / blend is the Pallas kernel below.
    def gather(yy, xx):
        idx = (jnp.clip(yy, 0, H - 1) * W + jnp.clip(xx, 0, W - 1)).reshape(B, 1, HWp)
        return jnp.take_along_axis(flat, jnp.broadcast_to(idx, (B, C, HWp)), axis=2)

    v00 = gather(iy0, ix0)
    v01 = gather(iy0, ix0 + 1)
    v10 = gather(iy0 + 1, ix0)
    v11 = gather(iy0 + 1, ix0 + 1)

    out = pl.pallas_call(
        functools.partial(_grid_sample_kernel, H=H, W=W),
        out_shape=jax.ShapeDtypeStruct((B, C, HWp), jnp.bfloat16),
        grid_spec=pltpu.PrefetchScalarGridSpec(
            num_scalar_prefetch=0, grid=(B,),
            in_specs=[pl.BlockSpec((1, 2, HWp), lambda b: (b, 0, 0))]
                     + [pl.BlockSpec((1, C, HWp), lambda b: (b, 0, 0))] * 4,
            out_specs=pl.BlockSpec((1, C, HWp), lambda b: (b, 0, 0))),
        compiler_params=pltpu.CompilerParams(dimension_semantics=("parallel",)),
    )(coords, v00, v01, v10, v11)
    out = out[:, :, :HW]                                 # (B, C, H*W) bf16
    return jnp.transpose(out, (0, 2, 1)).reshape(B, H, W, C)


# ---------------------------------------------------------------------------
# Deterministic synthetic parameters (weights pre-cast to bf16 for the MXU).
# ---------------------------------------------------------------------------
class _KeyGen:
    def __init__(self, seed):
        self._key = jax.random.PRNGKey(seed)

    def __call__(self):
        self._key, sub = jax.random.split(self._key)
        return sub


def _conv_w(kg, k, cin, cout):
    std = (2.0 / (k * k * cin)) ** 0.5
    return jax.random.normal(kg(), (k, k, cin, cout), jnp.float32) * std


def _make_conv(kg, k, cin, cout):
    w = _conv_w(kg, k, cin, cout).reshape(k * k * cin, cout).astype(jnp.bfloat16)
    b = 0.01 * jax.random.normal(kg(), (cout,), jnp.float32)
    return w, b


def _make_conv_bn(kg, k, cin, cout):
    # Conv (no bias) + BatchNorm folded using running stats (eval-mode form).
    # TODO(synk): train-mode BN (batch statistics) not reproduced.
    w = _conv_w(kg, k, cin, cout)
    gamma = 1.0 + 0.1 * jax.random.normal(kg(), (cout,), jnp.float32)
    beta = 0.05 * jax.random.normal(kg(), (cout,), jnp.float32)
    running_mean = jnp.zeros((cout,), jnp.float32)
    running_var = jnp.ones((cout,), jnp.float32)
    scale = gamma / jnp.sqrt(running_var + 1e-5)
    w_f = (w * scale).reshape(k * k * cin, cout).astype(jnp.bfloat16)
    b_f = beta - running_mean * scale
    return w_f, b_f


def _make_linear(kg, cin, cout):
    bound = 1.0 / (cin ** 0.5)
    w = jax.random.uniform(kg(), (cin, cout), jnp.float32, -bound, bound)
    b = jax.random.uniform(kg(), (cout,), jnp.float32, -bound, bound)
    return w.astype(jnp.bfloat16), b


def build_params(seed=42):
    kg = _KeyGen(seed)
    P = {}
    # STN localization: Conv(3,8,k7) MaxPool2 ReLU Conv(8,10,k5) MaxPool2 ReLU
    P["loc_c1"] = _make_conv(kg, 7, 3, 8)
    P["loc_c2"] = _make_conv(kg, 5, 8, 10)
    # fc_loc: Linear(52*52*10,32) ReLU Linear(32,6) with identity-affine init
    P["fc_loc1"] = _make_linear(kg, 52 * 52 * 10, 32)
    P["fc_loc2"] = (jnp.zeros((32, 6), jnp.bfloat16),
                    jnp.array([1, 0, 0, 0, 1, 0], jnp.float32))
    # ResNet-50 backbone (synthetic deterministic weights; frozen / inference)
    P["stem"] = _make_conv_bn(kg, 7, 3, 64)
    layers = []
    cin = 64
    for width, blocks, stride in [(64, 3, 1), (128, 4, 2), (256, 6, 2), (512, 3, 2)]:
        layer = []
        for bi in range(blocks):
            s = stride if bi == 0 else 1
            blk = {
                "c1": _make_conv_bn(kg, 1, cin, width),
                "c2": _make_conv_bn(kg, 3, width, width),
                "c3": _make_conv_bn(kg, 1, width, width * 4),
                "ds": (_make_conv_bn(kg, 1, cin, width * 4)
                       if (s != 1 or cin != width * 4) else None),
                "stride": s,
            }
            layer.append(blk)
            cin = width * 4
        layers.append(layer)
    P["layers"] = layers
    # Replaced fc head: Linear(2048,512) ReLU Dropout(0.2) Linear(512,10)
    P["fc1"] = _make_linear(kg, 2048, 512)
    P["fc2"] = _make_linear(kg, 512, 10)
    return P


# ---------------------------------------------------------------------------
# Forward passes
# ---------------------------------------------------------------------------
def _bottleneck(x, blk):
    out = conv2d(x, *blk["c1"], ksize=1, stride=1, pad=0, relu=True)
    out = conv2d(out, *blk["c2"], ksize=3, stride=blk["stride"], pad=1, relu=True)
    if blk["ds"] is not None:
        sc = conv2d(x, *blk["ds"], ksize=1, stride=blk["stride"], pad=0, relu=False)
    else:
        sc = x
    # residual add + ReLU fused into the c3 matmul epilogue
    return conv2d(out, *blk["c3"], sc, ksize=1, stride=1, pad=0, relu=True)


def resnet50_forward(x_nhwc, P):
    x = conv2d(x_nhwc, *P["stem"], ksize=7, stride=2, pad=3, relu=True)
    x = maxpool2d(x, ksize=3, stride=2, pad=1)
    for layer in P["layers"]:
        for blk in layer:
            x = _bottleneck(x, blk)
    x = global_avgpool(x)                                          # (B, 2048) f32
    x = pallas_matmul(x, *P["fc1"], relu=True, out_dtype=jnp.float32)
    # TODO(synk): Dropout(p=0.2) applied as identity (inference semantics);
    # train-mode stochastic masking is not reproduced.
    x = pallas_matmul(x, *P["fc2"], relu=False, out_dtype=jnp.float32)
    return x


def stn_forward(x_nchw, P):
    x_nhwc = jnp.transpose(x_nchw, (0, 2, 3, 1)).astype(jnp.bfloat16)
    xs = conv2d(x_nhwc, *P["loc_c1"], ksize=7, stride=1, pad=0, relu=False)
    xs = maxpool2d(xs, ksize=2, stride=2, pad=0, relu=True)
    xs = conv2d(xs, *P["loc_c2"], ksize=5, stride=1, pad=0, relu=False)
    xs = maxpool2d(xs, ksize=2, stride=2, pad=0, relu=True)        # (B,52,52,10)
    B = xs.shape[0]
    xs_flat = jnp.transpose(xs, (0, 3, 1, 2)).reshape(B, -1)       # torch NCHW flatten
    h = pallas_matmul(xs_flat, *P["fc_loc1"], relu=True, out_dtype=jnp.float32)
    theta = pallas_matmul(h, *P["fc_loc2"], relu=False, out_dtype=jnp.float32)
    return grid_sample_bilinear_nhwc(x_nchw, theta)                # (B,H,W,3) bf16


def spatial_transform_forward(x_nchw, P):
    x_t_nhwc = stn_forward(x_nchw, P)
    return resnet50_forward(x_t_nhwc, P)


if __name__ == "__main__":
    P = build_params(seed=42)
    # Input spatial size is pinned by fc_loc (52*52*10 features) => 3 x 222 x 222.
    x = jax.random.normal(jax.random.PRNGKey(0), (2, 3, 222, 222), jnp.float32)
    out = spatial_transform_forward(x, P)
    out = jax.block_until_ready(out)
    assert out.shape == (2, 10) and out.dtype == jnp.float32
    print("KERNEL_OK")
</pallas_src>

<mosaic_0001>
module attributes {stable_mosaic.version = 11 : i64} {
  func.func @_matmul_kernel(%arg0: i32, %arg1: i32, %arg2: i32, %arg3: memref<864x147xbf16, #tpu.memory_space<vmem>>, %arg4: memref<147x8xbf16, #tpu.memory_space<vmem>>, %arg5: memref<1x8xf32, #tpu.memory_space<vmem>>, %arg6: memref<864x8xbf16, #tpu.memory_space<vmem>>) attributes {dimension_semantics = [#tpu.dimension_semantics<parallel>, #tpu.dimension_semantics<parallel>, #tpu.dimension_semantics<arbitrary>], iteration_bounds = array<i64: 108, 1, 1>, scalar_prefetch = 0 : i64, scratch_operands = 0 : i64, tpu.core_type = #tpu.core_type<tc>, window_params = [{transform_indices = @transform_0, window_bounds = array<i64: 864, 147>}, {transform_indices = @transform_1, window_bounds = array<i64: 147, 8>}, {transform_indices = @transform_2, window_bounds = array<i64: 1, 8>}, {transform_indices = @transform_3, window_bounds = array<i64: 864, 8>}]} {
    %c0 = arith.constant 0 : index
    %c0_0 = arith.constant 0 : index
    %0 = vector.load %arg3[%c0, %c0_0] : memref<864x147xbf16, #tpu.memory_space<vmem>>, vector<864x147xbf16>
    %c0_1 = arith.constant 0 : index
    %c0_2 = arith.constant 0 : index
    %1 = vector.load %arg4[%c0_1, %c0_2] : memref<147x8xbf16, #tpu.memory_space<vmem>>, vector<147x8xbf16>
    %cst = arith.constant dense<0.000000e+00> : vector<864x8xf32>
    %2 = tpu.matmul %0, %1, %cst {dimension_numbers = #tpu.dot_dimension_numbers<[1], [0], [0], [1], [0, 0, 1, 1], [], []>} : vector<864x147xbf16>, vector<147x8xbf16>, vector<864x8xf32> -> vector<864x8xf32>
    %c0_3 = arith.constant 0 : index
    %c0_4 = arith.constant 0 : index
    %3 = vector.load %arg5[%c0_3, %c0_4] : memref<1x8xf32, #tpu.memory_space<vmem>>, vector<1x8xf32>
    %4 = vector.broadcast %3 : vector<1x8xf32> to vector<864x8xf32>
    %5 = arith.addf %2, %4 : vector<864x8xf32>
    %6 = arith.truncf %5 : vector<864x8xf32> to vector<864x8xbf16>
    %c0_5 = arith.constant 0 : index
    %c0_6 = arith.constant 0 : index
    %7 = vector.load %arg6[%c0_5, %c0_6] : memref<864x8xbf16, #tpu.memory_space<vmem>>, vector<864x8xbf16>
    tpu.vector_store %arg6[%c0_5, %c0_6], %6 {strides = array<i32>} : memref<864x8xbf16, #tpu.memory_space<vmem>>, vector<864x8xbf16>,
    return
  }
  func.func @transform_0(%arg0: i32, %arg1: i32, %arg2: i32) -> (i32, i32) {
    %c0_i32 = arith.constant 0 : i32
    return %arg0, %arg2 : i32, i32
  }
  func.func @transform_1(%arg0: i32, %arg1: i32, %arg2: i32) -> (i32, i32) {
    %c0_i32 = arith.constant 0 : i32
    return %arg2, %arg1 : i32, i32
  }
  func.func @transform_2(%arg0: i32, %arg1: i32, %arg2: i32) -> (i32, i32) {
    %c0_i32 = arith.constant 0 : i32
    %c0_i32_0 = arith.constant 0 : i32
    return %c0_i32, %arg1 : i32, i32
  }
  func.func @transform_3(%arg0: i32, %arg1: i32, %arg2: i32) -> (i32, i32) {
    %c0_i32 = arith.constant 0 : i32
    return %arg0, %arg1 : i32, i32
  }
}

</mosaic_0001>

<llo_original>
// kernel: pallas_matmul.1
$region0: #{pallas_matmul.1}
  #allocation0 [shape = 'u32[]', space=smem, size = 0x4, offset = 0x4, fixed_abs, tag = 'smem constant byte address 0x4 - core index']
  #allocation1 [shape = 'u32[72,128]{1,0:T(1,128)}', space=vmem, size = 0x9000, scoped, tag = 'internal scratch']
  %s0 = inlined_call_operand.vmem [shape: bf16[93312,147], index: 0, kind: input, shape index: {}]
  %s1 = inlined_call_operand.vmem [shape: bf16[147,8], index: 1, kind: input, shape index: {}]
  %s2 = inlined_call_operand.vmem [shape: f32[1,8], index: 2, kind: input, shape index: {}]
  %s3 = inlined_call_operand.vmem [shape: bf16[93312,8], index: 3, kind: output, shape index: {}]
  %s4 = sld [smem:[#allocation0]]
  $region45: #{pallas_matmul.1} parent=0
    _
  %s6 = ssub.s32 1, %s4
  %s7 = scalar_select 0, %s6, %s4
  loop: start=0, step=1, limit=110
  $region2: #{pallas_matmul.1} parent=0 // loop_pre_header
    _
  $region3: #{pallas_matmul.1} parent=0 // loop_header
    %s9 = sphi 0, %s13
    %p10 = scmp.ge.s32.totalorder %s9, 110
    %s16 = sphi 0, %s35
    %s17 = sphi 0, %s31
    %s18 = sphi 0, %s27
    %s19 = sphi 0, %s16
    %s20 = sphi 0, %s17
    %s21 = sphi 0, %s18
    %s22 = sphi 0, %s19
    %s23 = sphi 0, %s20
    %s24 = sphi 0, %s21
    %s40 = sphi 0, %s42
    %s43 = sphi 0, %s40
    %s44 = sphi 0, %s43
    %s60 = sphi 0, %s44
    %s68 = sphi 0, %s70
    %s71 = sphi 0, %s68
    %s72 = sphi 0, %s71
    %s88 = sphi 0, %s72
    %s94 = sphi 0, %s96
    %s97 = sphi 0, %s94
    %s98 = sphi 0, %s97
    %s114 = sphi 0, %s98
    %s122 = sphi 0, %s124
    %s125 = sphi 0, %s122
    %s126 = sphi 0, %s125
    %s142 = sphi 0, %s126
  $region4: #{pallas_matmul.1} parent=0 // loop_header_branch
    %12 = sbr.rel (%p10) target = $region8
  $region5: #{pallas_matmul.1} parent=0 // loop_body
    %s14 = ssub.s32 %s9, 1
    %s15 = ssub.s32 %s9, 2
    %s25 = sadd.s32 1, %s18
    %p26 = scmp.ge.s32.totalorder %s25, 1
    %s27 = scalar_select %p26, 0, %s25
    %s28 = sadd.s32 1, %s17
    %s29 = scalar_select %p26, %s28, %s17
    %p30 = scmp.ge.s32.totalorder %s29, 1
    %s31 = scalar_select %p30, 0, %s29
    %s32 = sadd.s32 1, %s16
    %s33 = scalar_select %p30, %s32, %s16
    %p34 = scmp.ge.s32.totalorder %s33, 108
    %s35 = scalar_select %p34, 0, %s33
    %s36 = ssub.s32 %s16, %s35
    %s37 = ssub.s32 %s18, %s27
    %s38 = sor.u32 %s36, %s37
    %p39 = scmp.eq.s32.totalorder %s38, 0
    %s41 = sadd.s32 %s40, 1
    %s42 = scalar_select %p39, %s40, %s41
    %p45 = pneg %p39
    %p46 = scmp.eq.s32.totalorder %s9, 107
    %p47 = por %p45, %p46
    %p48 = scmp.ne.s32.totalorder %s40, %s43
    %p49 = scmp.eq.s32.totalorder %s9, 0
    %p50 = por %p48, %p49
    %p51 = scmp.ne.s32.totalorder %s40, %s43
    %p52 = scmp.eq.s32.totalorder %s14, 107
    %p53 = por %p51, %p52
    %p54 = scmp.ne.s32.totalorder %s43, %s44
    %p55 = scmp.eq.s32.totalorder %s14, 0
    %p56 = por %p54, %p55
    %p57 = scmp.ne.s32.totalorder %s43, %s44
    %p58 = scmp.eq.s32.totalorder %s15, 107
    %p59 = por %p57, %p58
    %p61 = scmp.ne.s32.totalorder %s44, %s60
    %p62 = scmp.eq.s32.totalorder %s15, 0
    %p63 = por %p61, %p62
    %s64 = ssub.s32 %s18, %s27
    %s65 = ssub.s32 %s17, %s31
    %s66 = sor.u32 %s64, %s65
    %p67 = scmp.eq.s32.totalorder %s66, 0
    %s69 = sadd.s32 %s68, 1
    %s70 = scalar_select %p67, %s68, %s69
    %p73 = pneg %p67
    %p74 = scmp.eq.s32.totalorder %s9, 107
    %p75 = por %p73, %p74
    %p76 = scmp.ne.s32.totalorder %s68, %s71
    %p77 = scmp.eq.s32.totalorder %s9, 0
    %p78 = por %p76, %p77
    %p79 = scmp.ne.s32.totalorder %s68, %s71
    %p80 = scmp.eq.s32.totalorder %s14, 107
    %p81 = por %p79, %p80
    %p82 = scmp.ne.s32.totalorder %s71, %s72
    %p83 = scmp.eq.s32.totalorder %s14, 0
    %p84 = por %p82, %p83
    %p85 = scmp.ne.s32.totalorder %s71, %s72
    %p86 = scmp.eq.s32.totalorder %s15, 107
    %p87 = por %p85, %p86
    %p89 = scmp.ne.s32.totalorder %s72, %s88
    %p90 = scmp.eq.s32.totalorder %s15, 0
    %p91 = por %p89, %p90
    %s92 = ssub.s32 %s17, %s31
    %p93 = scmp.eq.s32.totalorder %s92, 0
    %s95 = sadd.s32 %s94, 1
    %s96 = scalar_select %p93, %s94, %s95
    %p99 = pneg %p93
    %p100 = scmp.eq.s32.totalorder %s9, 107
    %p101 = por %p99, %p100
    %p102 = scmp.ne.s32.totalorder %s94, %s97
    %p103 = scmp.eq.s32.totalorder %s9, 0
    %p104 = por %p102, %p103
    %p105 = scmp.ne.s32.totalorder %s94, %s97
    %p106 = scmp.eq.s32.totalorder %s14, 107
    %p107 = por %p105, %p106
    %p108 = scmp.ne.s32.totalorder %s97, %s98
    %p109 = scmp.eq.s32.totalorder %s14, 0
    %p110 = por %p108, %p109
    %p111 = scmp.ne.s32.totalorder %s97, %s98
    %p112 = scmp.eq.s32.totalorder %s15, 107
    %p113 = por %p111, %p112
    %p115 = scmp.ne.s32.totalorder %s98, %s114
    %p116 = scmp.eq.s32.totalorder %s15, 0
    %p117 = por %p115, %p116
    %s118 = ssub.s32 %s16, %s35
    %s119 = ssub.s32 %s17, %s31
    %s120 = sor.u32 %s118, %s119
    %p121 = scmp.eq.s32.totalorder %s120, 0
    %s123 = sadd.s32 %s122, 1
    %s124 = scalar_select %p121, %s122, %s123
    %p127 = pneg %p121
    %p128 = scmp.eq.s32.totalorder %s9, 107
    %p129 = por %p127, %p128
    %p130 = scmp.ne.s32.totalorder %s122, %s125
    %p131 = scmp.eq.s32.totalorder %s9, 0
    %p132 = por %p130, %p131
    %p133 = scmp.ne.s32.totalorder %s122, %s125
    %p134 = scmp.eq.s32.totalorder %s14, 107
    %p135 = por %p133, %p134
    %p136 = scmp.ne.s32.totalorder %s125, %s126
    %p137 = scmp.eq.s32.totalorder %s14, 0
    %p138 = por %p136, %p137
    %p139 = scmp.ne.s32.totalorder %s125, %s126
    %p140 = scmp.eq.s32.totalorder %s15, 107
    %p141 = por %p139, %p140
    %p143 = scmp.ne.s32.totalorder %s126, %s142
    %p144 = scmp.eq.s32.totalorder %s15, 0
    %p145 = por %p143, %p144
    %p146 = scmp.le.s32.totalorder 1, %s9
    %p147 = scmp.lt.s32.totalorder %s9, 109
    %p148 = pnand %p146, %p147
    %p149 = pneg %p148
    // Predicated region
    $region9: #{pallas_matmul.1} parent=5 // pred_check
      _
    $region10: #{pallas_matmul.1} parent=5 // pred_check_branch
      %151 = sbr.rel (%p148) target = $region12
    $region11: #{pallas_matmul.1} parent=5 // pred_region
      %s152 = ssub.s32 %s9, 1
      // Predicated region
      $region13: #{pallas_matmul.1} parent=11 // pred_check
        %p153 = pneg %p84
      $region14: #{pallas_matmul.1} parent=11 // pred_check_branch
        %155 = sbr.rel (%p153) target = $region16
      $region15: #{pallas_matmul.1} parent=11 // pred_region
        %s156 = smul.u32 19, %s21
        %p157 = scmp.lt.s32.totalorder %s156, 18
        %s158 = scalar_select %p157, %s156, 18
        %p159 = scmp.lt.s32.totalorder %s20, 0
        %s160 = scalar_select %p159, %s20, 0
        %s161 = sadd.s32 %s160, %s158
        %s162 = smul.addr %s161, 4
        %s163 = scalar_lea.vmem %s1, %s162
        %s164 = smul.u32 19, %s21
      $region16: #{pallas_matmul.1} parent=11 // pred_fallthru
        _
      // Predicated region
      $region17: #{pallas_matmul.1} parent=11 // pred_check
        %p165 = pneg %p110
      $region18: #{pallas_matmul.1} parent=11 // pred_check_branch
        %167 = sbr.rel (%p165) target = $region20
      $region19: #{pallas_matmul.1} parent=11 // pred_region
        %p168 = scmp.lt.s32.totalorder %s20, 0
        %s169 = scalar_select %p168, %s20, 0
        %s170 = scalar_lea.vmem %s2, %s169
      $region20: #{pallas_matmul.1} parent=11 // pred_fallthru
        _
    $region12: #{pallas_matmul.1} parent=5 // pred_fallthru
      _
    %p171 = scmp.lt.s32.totalorder %s9, 108
    // Predicated region
    $region21: #{pallas_matmul.1} parent=5 // pred_check
      %p172 = pneg %p171
    $region22: #{pallas_matmul.1} parent=5 // pred_check_branch
      %174 = sbr.rel (%p172) target = $region24
    $region23: #{pallas_matmul.1} parent=5 // pred_region
      // Predicated region
      $region25: #{pallas_matmul.1} parent=23 // pred_check
        %p175 = pneg %p50
      $region26: #{pallas_matmul.1} parent=23 // pred_check_branch
        %177 = sbr.rel (%p175) target = $region28
      $region27: #{pallas_matmul.1} parent=23 // pred_region
        %s178 = smul.u32 108, %s16
        %s179 = smul.u32 2, %s18
        %p180 = scmp.lt.s32.totalorder %s178, 11663
        %s181 = scalar_select %p180, %s178, 11663
        %p182 = scmp.lt.s32.totalorder %s179, 1
        %s183 = scalar_select %p182, %s179, 1
        %s184 = smul.addr %s181, 2
        %s185 = sadd.s32 %s183, %s184
        %s186 = smul.addr %s185, 4
        %s187 = scalar_lea.vmem %s0, %s186
        %s188 = smul.u32 108, %s16
        %s189 = smul.u32 2, %s18
      $region28: #{pallas_matmul.1} parent=23 // pred_fallthru
        _
    $region24: #{pallas_matmul.1} parent=5 // pred_fallthru
      _
    %p190 = scmp.le.s32.totalorder 1, %s9
    %p191 = scmp.lt.s32.totalorder %s9, 109
    %p192 = pnand %p190, %p191
    %p193 = pneg %p192
    // Predicated region
    $region29: #{pallas_matmul.1} parent=5 // pred_check
      _
    $region30: #{pallas_matmul.1} parent=5 // pred_check_branch
      %195 = sbr.rel (%p192) target = $region32
    $region31: #{pallas_matmul.1} parent=5 // pred_region
      %s196 = ssub.s32 %s9, 1
      %s197 = smul.u32 108, %s19
      %s198 = smul.u32 2, %s21
      %p199 = scmp.lt.s32.totalorder %s197, 11663
      %s200 = scalar_select %p199, %s197, 11663
      %p201 = scmp.lt.s32.totalorder %s198, 1
      %s202 = scalar_select %p201, %s198, 1
      %s203 = smul.addr %s200, 2
      %s204 = sadd.s32 %s202, %s203
      %s205 = smul.addr %s204, 4
      %s206 = scalar_lea.vmem %s0, %s205
      %p207 = pneg %p56
      %p208 = pneg %p53
      %s209 = smul.u32 19, %s21
      %p210 = scmp.lt.s32.totalorder %s209, 18
      %s211 = scalar_select %p210, %s209, 18
      %p212 = scmp.lt.s32.totalorder %s20, 0
      %s213 = scalar_select %p212, %s20, 0
      %s214 = sadd.s32 %s213, %s211
      %s215 = smul.addr %s214, 4
      %s216 = scalar_lea.vmem %s1, %s215
      %p217 = pneg %p84
      %p218 = pneg %p81
      %p219 = scmp.lt.s32.totalorder %s20, 0
      %s220 = scalar_select %p219, %s20, 0
      %s221 = scalar_lea.vmem %s2, %s220
      %p222 = pneg %p110
      %p223 = pneg %p107
      %p224 = pneg %p138
      %p225 = pneg %p135
      %s226 = smul.u32 108, %s19
      %p227 = scmp.lt.s32.totalorder %s226, 11663
      %s228 = scalar_select %p227, %s226, 11663
      %p229 = scmp.lt.s32.totalorder %s20, 0
      %s230 = scalar_select %p229, %s20, 0
      %s231 = sadd.s32 %s230, %s228
      %s232 = smul.addr %s231, 4
      %s233 = scalar_lea.vmem %s3, %s232
      %s234 = smul.u32 108, %s19
      %s235 = smul.u32 2, %s21
      %p236 = scmp.lt.s32.totalorder %s234, 11663
      %s237 = scalar_select %p236, %s234, 11663
      %p238 = scmp.lt.s32.totalorder %s235, 1
      %s239 = scalar_select %p238, %s235, 1
      %s240 = smul.addr %s237, 2
      %s241 = sadd.s32 %s239, %s240
      %s242 = smul.addr %s241, 4
      %s243 = scalar_lea.vmem %s0, %s242
      %s244 = smul.u32 108, %s19
      %s245 = smul.u32 2, %s21
      %s246 = smul.u32 19, %s21
      %p247 = scmp.lt.s32.totalorder %s246, 18
      %s248 = scalar_select %p247, %s246, 18
      %p249 = scmp.lt.s32.totalorder %s20, 0
      %s250 = scalar_select %p249, %s20, 0
      %s251 = sadd.s32 %s250, %s248
      %s252 = smul.addr %s251, 4
      %s253 = scalar_lea.vmem %s1, %s252
      %s254 = smul.u32 19, %s21
      %p255 = scmp.lt.s32.totalorder %s20, 0
      %s256 = scalar_select %p255, %s20, 0
      %s257 = scalar_lea.vmem %s2, %s256
      %s258 = smul.u32 108, %s19
      %p259 = scmp.lt.s32.totalorder %s258, 11663
      %s260 = scalar_select %p259, %s258, 11663
      %p261 = scmp.lt.s32.totalorder %s20, 0
      %s262 = scalar_select %p261, %s20, 0
      %s263 = sadd.s32 %s262, %s260
      %s264 = smul.addr %s263, 4
      %s265 = scalar_lea.vmem %s3, %s264
      %s266 = smul.u32 108, %s19
      %v268 = vld [vmem:[%s243] sm:$0xff]
      %v269 = vld [vmem:[%s243 + $0x8] sm:$0xff]
      %v270 = vld [vmem:[%s243 + $0x10] sm:$0xff]
      %v271 = vld [vmem:[%s243 + $0x18] sm:$0xff]
      %v272 = vld [vmem:[%s243 + $0x20] sm:$0xff]
      %v273 = vld [vmem:[%s243 + $0x28] sm:$0xff]
      %v274 = vld [vmem:[%s243 + $0x30] sm:$0xff]
      %v275 = vld [vmem:[%s243 + $0x38] sm:$0xff]
      %v276 = vld [vmem:[%s243 + $0x40] sm:$0xff]
      %v277 = vld [vmem:[%s243 + $0x48] sm:$0xff]
      %v278 = vld [vmem:[%s243 + $0x50] sm:$0xff]
      %v279 = vld [vmem:[%s243 + $0x58] sm:$0xff]
      %v280 = vld [vmem:[%s243 + $0x60] sm:$0xff]
      %v281 = vld [vmem:[%s243 + $0x68] sm:$0xff]
      %v282 = vld [vmem:[%s243 + $0x70] sm:$0xff]
      %v283 = vld [vmem:[%s243 + $0x78] sm:$0xff]
      %v284 = vld [vmem:[%s243 + $0x80] sm:$0xff]
      %v285 = vld [vmem:[%s243 + $0x88] sm:$0xff]
      %v286 = vld [vmem:[%s243 + $0x90] sm:$0xff]
      %v287 = vld [vmem:[%s243 + $0x98] sm:$0xff]
      %v288 = vld [vmem:[%s243 + $0xa0] sm:$0xff]
      %v289 = vld [vmem:[%s243 + $0xa8] sm:$0xff]
      %v290 = vld [vmem:[%s243 + $0xb0] sm:$0xff]
      %v291 = vld [vmem:[%s243 + $0xb8] sm:$0xff]
      %v292 = vld [vmem:[%s243 + $0xc0] sm:$0xff]
      %v293 = vld [vmem:[%s243 + $0xc8] sm:$0xff]
      %v294 = vld [vmem:[%s243 + $0xd0] sm:$0xff]
      %v295 = vld [vmem:[%s243 + $0xd8] sm:$0xff]
      %v296 = vld [vmem:[%s243 + $0xe0] sm:$0xff]
      %v297 = vld [vmem:[%s243 + $0xe8] sm:$0xff]
      %v298 = vld [vmem:[%s243 + $0xf0] sm:$0xff]
      %v299 = vld [vmem:[%s243 + $0xf8] sm:$0xff]
      %v300 = vld [vmem:[%s243 + $0x100] sm:$0xff]
      %v301 = vld [vmem:[%s243 + $0x108] sm:$0xff]
      %v302 = vld [vmem:[%s243 + $0x110] sm:$0xff]
      %v303 = vld [vmem:[%s243 + $0x118] sm:$0xff]
      %v304 = vld [vmem:[%s243 + $0x120] sm:$0xff]
      %v305 = vld [vmem:[%s243 + $0x128] sm:$0xff]
      %v306 = vld [vmem:[%s243 + $0x130] sm:$0xff]
      %v307 = vld [vmem:[%s243 + $0x138] sm:$0xff]
      %v308 = vld [vmem:[%s243 + $0x140] sm:$0xff]
      %v309 = vld [vmem:[%s243 + $0x148] sm:$0xff]
      %v310 = vld [vmem:[%s243 + $0x150] sm:$0xff]
      %v311 = vld [vmem:[%s243 + $0x158] sm:$0xff]
      %v312 = vld [vmem:[%s243 + $0x160] sm:$0xff]
      %v313 = vld [vmem:[%s243 + $0x168] sm:$0xff]
      %v314 = vld [vmem:[%s243 + $0x170] sm:$0xff]
      %v315 = vld [vmem:[%s243 + $0x178] sm:$0xff]
      %v316 = vld [vmem:[%s243 + $0x180] sm:$0xff]
      %v317 = vld [vmem:[%s243 + $0x188] sm:$0xff]
      %v318 = vld [vmem:[%s243 + $0x190] sm:$0xff]
      %v319 = vld [vmem:[%s243 + $0x198] sm:$0xff]
      %v320 = vld [vmem:[%s243 + $0x1a0] sm:$0xff]
      %v321 = vld [vmem:[%s243 + $0x1a8] sm:$0xff]
      %v322 = vld [vmem:[%s243 + $0x1b0] sm:$0xff]
      %v323 = vld [vmem:[%s243 + $0x1b8] sm:$0xff]
      %v324 = vld [vmem:[%s243 + $0x1c0] sm:$0xff]
      %v325 = vld [vmem:[%s243 + $0x1c8] sm:$0xff]
      %v326 = vld [vmem:[%s243 + $0x1d0] sm:$0xff]
      %v327 = vld [vmem:[%s243 + $0x1d8] sm:$0xff]
      %v328 = vld [vmem:[%s243 + $0x1e0] sm:$0xff]
      %v329 = vld [vmem:[%s243 + $0x1e8] sm:$0xff]
      %v330 = vld [vmem:[%s243 + $0x1f0] sm:$0xff]
      %v331 = vld [vmem:[%s243 + $0x1f8] sm:$0xff]
      %v332 = vld [vmem:[%s243 + $0x200] sm:$0xff]
      %v333 = vld [vmem:[%s243 + $0x208] sm:$0xff]
      %v334 = vld [vmem:[%s243 + $0x210] sm:$0xff]
      %v335 = vld [vmem:[%s243 + $0x218] sm:$0xff]
      %v336 = vld [vmem:[%s243 + $0x220] sm:$0xff]
      %v337 = vld [vmem:[%s243 + $0x228] sm:$0xff]
      %v338 = vld [vmem:[%s243 + $0x230] sm:$0xff]
      %v339 = vld [vmem:[%s243 + $0x238] sm:$0xff]
      %v340 = vld [vmem:[%s243 + $0x240] sm:$0xff]
      %v341 = vld [vmem:[%s243 + $0x248] sm:$0xff]
      %v342 = vld [vmem:[%s243 + $0x250] sm:$0xff]
      %v343 = vld [vmem:[%s243 + $0x258] sm:$0xff]
      %v344 = vld [vmem:[%s243 + $0x260] sm:$0xff]
      %v345 = vld [vmem:[%s243 + $0x268] sm:$0xff]
      %v346 = vld [vmem:[%s243 + $0x270] sm:$0xff]
      %v347 = vld [vmem:[%s243 + $0x278] sm:$0xff]
      %v348 = vld [vmem:[%s243 + $0x280] sm:$0xff]
      %v349 = vld [vmem:[%s243 + $0x288] sm:$0xff]
      %v350 = vld [vmem:[%s243 + $0x290] sm:$0xff]
      %v351 = vld [vmem:[%s243 + $0x298] sm:$0xff]
      %v352 = vld [vmem:[%s243 + $0x2a0] sm:$0xff]
      %v353 = vld [vmem:[%s243 + $0x2a8] sm:$0xff]
      %v354 = vld [vmem:[%s243 + $0x2b0] sm:$0xff]
      %v355 = vld [vmem:[%s243 + $0x2b8] sm:$0xff]
      %v356 = vld [vmem:[%s243 + $0x2c0] sm:$0xff]
      %v357 = vld [vmem:[%s243 + $0x2c8] sm:$0xff]
      %v358 = vld [vmem:[%s243 + $0x2d0] sm:$0xff]
      %v359 = vld [vmem:[%s243 + $0x2d8] sm:$0xff]
      %v360 = vld [vmem:[%s243 + $0x2e0] sm:$0xff]
      %v361 = vld [vmem:[%s243 + $0x2e8] sm:$0xff]
      %v362 = vld [vmem:[%s243 + $0x2f0] sm:$0xff]
      %v363 = vld [vmem:[%s243 + $0x2f8] sm:$0xff]
      %v364 = vld [vmem:[%s243 + $0x300] sm:$0xff]
      %v365 = vld [vmem:[%s243 + $0x308] sm:$0xff]
      %v366 = vld [vmem:[%s243 + $0x310] sm:$0xff]
      %v367 = vld [vmem:[%s243 + $0x318] sm:$0xff]
      %v368 = vld [vmem:[%s243 + $0x320] sm:$0xff]
      %v369 = vld [vmem:[%s243 + $0x328] sm:$0xff]
      %v370 = vld [vmem:[%s243 + $0x330] sm:$0xff]
      %v371 = vld [vmem:[%s243 + $0x338] sm:$0xff]
      %v372 = vld [vmem:[%s243 + $0x340] sm:$0xff]
      %v373 = vld [vmem:[%s243 + $0x348] sm:$0xff]
      %v374 = vld [vmem:[%s243 + $0x350] sm:$0xff]
      %v375 = vld [vmem:[%s243 + $0x358] sm:$0xff]
      %v376 = vld [vmem:[%s253] sm:$0xf]
      %v377 = vld [vmem:[%s253 + $0x4] sm:$0xf]
      %v378 = vld [vmem:[%s253 + $0x8] sm:$0xf]
      %v379 = vld [vmem:[%s253 + $0xc] sm:$0xf]
      %v380 = vld [vmem:[%s253 + $0x10] sm:$0xf]
      %v381 = vld [vmem:[%s253 + $0x14] sm:$0xf]
      %v382 = vld [vmem:[%s253 + $0x18] sm:$0xf]
      %v383 = vld [vmem:[%s253 + $0x1c] sm:$0xf]
      %v384 = vld [vmem:[%s253 + $0x20] sm:$0xf]
      %v385 = vld [vmem:[%s253 + $0x24] sm:$0xf]
      %v386 = vld [vmem:[%s253 + $0x28] sm:$0xf]
      %v387 = vld [vmem:[%s253 + $0x2c] sm:$0xf]
      %v388 = vld [vmem:[%s253 + $0x30] sm:$0xf]
      %v389 = vld [vmem:[%s253 + $0x34] sm:$0xf]
      %v390 = vld [vmem:[%s253 + $0x38] sm:$0xf]
      %v391 = vld [vmem:[%s253 + $0x3c] sm:$0xf]
      %v392 = vld [vmem:[%s253 + $0x40] sm:$0xf]
      %v393 = vld [vmem:[%s253 + $0x44] sm:$0xf]
      %v394 = vld [vmem:[%s253 + $0x48] sm:$0x3]
      %v395 = vld [vmem:[%s257] sm:$0x1]
      %v397 = vperm.slane %v395, 0
      %v507 = vunpack.c.l.b16 %v268
      %v508 = vunpack.c.h.b16 %v268
      %v509 = vunpack.c.l.b16 %v269
      %v510 = vunpack.c.h.b16 %v269
      %v511 = vunpack.c.l.b16 %v270
      %v512 = vunpack.c.h.b16 %v270
      %v513 = vunpack.c.l.b16 %v271
      %v514 = vunpack.c.h.b16 %v271
      %v515 = vunpack.c.l.b16 %v272
      %v516 = vunpack.c.h.b16 %v272
      %v517 = vunpack.c.l.b16 %v273
      %v518 = vunpack.c.h.b16 %v273
      %v519 = vunpack.c.l.b16 %v274
      %v520 = vunpack.c.h.b16 %v274
      %v521 = vunpack.c.l.b16 %v275
      %v522 = vunpack.c.h.b16 %v275
      %v523 = vunpack.c.l.b16 %v276
      %v524 = vunpack.c.h.b16 %v276
      %v525 = vunpack.c.l.b16 %v277
      %v526 = vunpack.c.h.b16 %v277
      %v527 = vunpack.c.l.b16 %v278
      %v528 = vunpack.c.h.b16 %v278
      %v529 = vunpack.c.l.b16 %v279
      %v530 = vunpack.c.h.b16 %v279
      %v531 = vunpack.c.l.b16 %v280
      %v532 = vunpack.c.h.b16 %v280
      %v533 = vunpack.c.l.b16 %v281
      %v534 = vunpack.c.h.b16 %v281
      %v535 = vunpack.c.l.b16 %v282
      %v536 = vunpack.c.h.b16 %v282
      %v537 = vunpack.c.l.b16 %v283
      %v538 = vunpack.c.h.b16 %v283
      %v539 = vunpack.c.l.b16 %v284
      %v540 = vunpack.c.h.b16 %v284
      %v541 = vunpack.c.l.b16 %v285
      %v542 = vunpack.c.h.b16 %v285
      %v543 = vunpack.c.l.b16 %v286
      %v544 = vunpack.c.h.b16 %v286
      %v545 = vunpack.c.l.b16 %v287
      %v546 = vunpack.c.h.b16 %v287
      %v547 = vunpack.c.l.b16 %v288
      %v548 = vunpack.c.h.b16 %v288
      %v549 = vunpack.c.l.b16 %v289
      %v550 = vunpack.c.h.b16 %v289
      %v551 = vunpack.c.l.b16 %v290
      %v552 = vunpack.c.h.b16 %v290
      %v553 = vunpack.c.l.b16 %v291
      %v554 = vunpack.c.h.b16 %v291
      %v555 = vunpack.c.l.b16 %v292
      %v556 = vunpack.c.h.b16 %v292
      %v557 = vunpack.c.l.b16 %v293
      %v558 = vunpack.c.h.b16 %v293
      %v559 = vunpack.c.l.b16 %v294
      %v560 = vunpack.c.h.b16 %v294
      %v561 = vunpack.c.l.b16 %v295
      %v562 = vunpack.c.h.b16 %v295
      %v563 = vunpack.c.l.b16 %v296
      %v564 = vunpack.c.h.b16 %v296
      %v565 = vunpack.c.l.b16 %v297
      %v566 = vunpack.c.h.b16 %v297
      %v567 = vunpack.c.l.b16 %v298
      %v568 = vunpack.c.h.b16 %v298
      %v569 = vunpack.c.l.b16 %v299
      %v570 = vunpack.c.h.b16 %v299
      %v571 = vunpack.c.l.b16 %v300
      %v572 = vunpack.c.h.b16 %v300
      %v573 = vunpack.c.l.b16 %v301
      %v574 = vunpack.c.h.b16 %v301
      %v575 = vunpack.c.l.b16 %v302
      %v576 = vunpack.c.h.b16 %v302
      %v577 = vunpack.c.l.b16 %v303
      %v578 = vunpack.c.h.b16 %v303
      %v579 = vunpack.c.l.b16 %v304
      %v580 = vunpack.c.h.b16 %v304
      %v581 = vunpack.c.l.b16 %v305
      %v582 = vunpack.c.h.b16 %v305
      %v583 = vunpack.c.l.b16 %v306
      %v584 = vunpack.c.h.b16 %v306
      %v585 = vunpack.c.l.b16 %v307
      %v586 = vunpack.c.h.b16 %v307
      %v587 = vunpack.c.l.b16 %v308
      %v588 = vunpack.c.h.b16 %v308
      %v589 = vunpack.c.l.b16 %v309
      %v590 = vunpack.c.h.b16 %v309
      %v591 = vunpack.c.l.b16 %v310
      %v592 = vunpack.c.h.b16 %v310
      %v593 = vunpack.c.l.b16 %v311
      %v594 = vunpack.c.h.b16 %v311
      %v595 = vunpack.c.l.b16 %v312
      %v596 = vunpack.c.h.b16 %v312
      %v597 = vunpack.c.l.b16 %v313
      %v598 = vunpack.c.h.b16 %v313
      %v599 = vunpack.c.l.b16 %v314
      %v600 = vunpack.c.h.b16 %v314
      %v601 = vunpack.c.l.b16 %v315
      %v602 = vunpack.c.h.b16 %v315
      %v603 = vunpack.c.l.b16 %v316
      %v604 = vunpack.c.h.b16 %v316
      %v605 = vunpack.c.l.b16 %v317
      %v606 = vunpack.c.h.b16 %v317
      %v607 = vunpack.c.l.b16 %v318
      %v608 = vunpack.c.h.b16 %v318
      %v609 = vunpack.c.l.b16 %v319
      %v610 = vunpack.c.h.b16 %v319
      %v611 = vunpack.c.l.b16 %v320
      %v612 = vunpack.c.h.b16 %v320
      %v613 = vunpack.c.l.b16 %v321
      %v614 = vunpack.c.h.b16 %v321
      %v615 = vunpack.c.l.b16 %v322
      %v616 = vunpack.c.h.b16 %v322
      %v617 = vunpack.c.l.b16 %v323
      %v618 = vunpack.c.h.b16 %v323
      %v619 = vunpack.c.l.b16 %v324
      %v620 = vunpack.c.h.b16 %v324
      %v621 = vunpack.c.l.b16 %v325
      %v622 = vunpack.c.h.b16 %v325
      %v623 = vunpack.c.l.b16 %v326
      %v624 = vunpack.c.h.b16 %v326
      %v625 = vunpack.c.l.b16 %v327
      %v626 = vunpack.c.h.b16 %v327
      %v627 = vunpack.c.l.b16 %v328
      %v628 = vunpack.c.h.b16 %v328
      %v629 = vunpack.c.l.b16 %v329
      %v630 = vunpack.c.h.b16 %v329
      %v631 = vunpack.c.l.b16 %v330
      %v632 = vunpack.c.h.b16 %v330
      %v633 = vunpack.c.l.b16 %v331
      %v634 = vunpack.c.h.b16 %v331
      %v635 = vunpack.c.l.b16 %v332
      %v636 = vunpack.c.h.b16 %v332
      %v637 = vunpack.c.l.b16 %v333
      %v638 = vunpack.c.h.b16 %v333
      %v639 = vunpack.c.l.b16 %v334
      %v640 = vunpack.c.h.b16 %v334
      %v641 = vunpack.c.l.b16 %v335
      %v642 = vunpack.c.h.b16 %v335
      %v643 = vunpack.c.l.b16 %v336
      %v644 = vunpack.c.h.b16 %v336
      %v645 = vunpack.c.l.b16 %v337
      %v646 = vunpack.c.h.b16 %v337
      %v647 = vunpack.c.l.b16 %v338
      %v648 = vunpack.c.h.b16 %v338
      %v649 = vunpack.c.l.b16 %v339
      %v650 = vunpack.c.h.b16 %v339
      %v651 = vunpack.c.l.b16 %v340
      %v652 = vunpack.c.h.b16 %v340
      %v653 = vunpack.c.l.b16 %v341
      %v654 = vunpack.c.h.b16 %v341
      %v655 = vunpack.c.l.b16 %v342
      %v656 = vunpack.c.h.b16 %v342
      %v657 = vunpack.c.l.b16 %v343
      %v658 = vunpack.c.h.b16 %v343
      %v659 = vunpack.c.l.b16 %v344
      %v660 = vunpack.c.h.b16 %v344
      %v661 = vunpack.c.l.b16 %v345
      %v662 = vunpack.c.h.b16 %v345
      %v663 = vunpack.c.l.b16 %v346
      %v664 = vunpack.c.h.b16 %v346
      %v665 = vunpack.c.l.b16 %v347
      %v666 = vunpack.c.h.b16 %v347
      %v667 = vunpack.c.l.b16 %v348
      %v668 = vunpack.c.h.b16 %v348
      %v669 = vunpack.c.l.b16 %v349
      %v670 = vunpack.c.h.b16 %v349
      %v671 = vunpack.c.l.b16 %v350
      %v672 = vunpack.c.h.b16 %v350
      %v673 = vunpack.c.l.b16 %v351
      %v674 = vunpack.c.h.b16 %v351
      %v675 = vunpack.c.l.b16 %v352
      %v676 = vunpack.c.h.b16 %v352
      %v677 = vunpack.c.l.b16 %v353
      %v678 = vunpack.c.h.b16 %v353
      %v679 = vunpack.c.l.b16 %v354
      %v680 = vunpack.c.h.b16 %v354
      %v681 = vunpack.c.l.b16 %v355
      %v682 = vunpack.c.h.b16 %v355
      %v683 = vunpack.c.l.b16 %v356
      %v684 = vunpack.c.h.b16 %v356
      %v685 = vunpack.c.l.b16 %v357
      %v686 = vunpack.c.h.b16 %v357
      %v687 = vunpack.c.l.b16 %v358
      %v688 = vunpack.c.h.b16 %v358
      %v689 = vunpack.c.l.b16 %v359
      %v690 = vunpack.c.h.b16 %v359
      %v691 = vunpack.c.l.b16 %v360
      %v692 = vunpack.c.h.b16 %v360
      %v693 = vunpack.c.l.b16 %v361
      %v694 = vunpack.c.h.b16 %v361
      %v695 = vunpack.c.l.b16 %v362
      %v696 = vunpack.c.h.b16 %v362
      %v697 = vunpack.c.l.b16 %v363
      %v698 = vunpack.c.h.b16 %v363
      %v699 = vunpack.c.l.b16 %v364
      %v700 = vunpack.c.h.b16 %v364
      %v701 = vunpack.c.l.b16 %v365
      %v702 = vunpack.c.h.b16 %v365
      %v703 = vunpack.c.l.b16 %v366
      %v704 = vunpack.c.h.b16 %v366
      %v705 = vunpack.c.l.b16 %v367
      %v706 = vunpack.c.h.b16 %v367
      %v707 = vunpack.c.l.b16 %v368
      %v708 = vunpack.c.h.b16 %v368
      %v709 = vunpack.c.l.b16 %v369
      %v710 = vunpack.c.h.b16 %v369
      %v711 = vunpack.c.l.b16 %v370
      %v712 = vunpack.c.h.b16 %v370
      %v713 = vunpack.c.l.b16 %v371
      %v714 = vunpack.c.h.b16 %v371
      %v715 = vunpack.c.l.b16 %v372
      %v716 = vunpack.c.h.b16 %v372
      %v717 = vunpack.c.l.b16 %v373
      %v718 = vunpack.c.h.b16 %v373
      %v719 = vunpack.c.l.b16 %v374
      %v720 = vunpack.c.h.b16 %v374
      %v721 = vunpack.c.l.b16 %v375
      %v722 = vunpack.c.h.b16 %v375
      %v723 = vpack.c.b16 %v509, %v507
      %v724 = vpack.c.b16 %v510, %v508
      %v725 = vpack.c.b16 %v513, %v511
      %v726 = vpack.c.b16 %v514, %v512
      %v727 = vpack.c.b16 %v517, %v515
      %v728 = vpack.c.b16 %v518, %v516
      %v729 = vpack.c.b16 %v521, %v519
      %v730 = vpack.c.b16 %v522, %v520
      %v731 = vpack.c.b16 %v525, %v523
      %v732 = vpack.c.b16 %v526, %v524
      %v733 = vpack.c.b16 %v529, %v527
      %v734 = vpack.c.b16 %v530, %v528
      %v735 = vpack.c.b16 %v533, %v531
      %v736 = vpack.c.b16 %v534, %v532
      %v737 = vpack.c.b16 %v537, %v535
      %v738 = vpack.c.b16 %v538, %v536
      %v739 = vpack.c.b16 %v541, %v539
      %v740 = vpack.c.b16 %v542, %v540
      %v741 = vpack.c.b16 %v545, %v543
      %v742 = vpack.c.b16 %v546, %v544
      %v743 = vpack.c.b16 %v549, %v547
      %v744 = vpack.c.b16 %v550, %v548
      %v745 = vpack.c.b16 %v553, %v551
      %v746 = vpack.c.b16 %v554, %v552
      %v747 = vpack.c.b16 %v557, %v555
      %v748 = vpack.c.b16 %v558, %v556
      %v749 = vpack.c.b16 %v561, %v559
      %v750 = vpack.c.b16 %v562, %v560
      %v751 = vpack.c.b16 %v565, %v563
      %v752 = vpack.c.b16 %v566, %v564
      %v753 = vpack.c.b16 %v569, %v567
      %v754 = vpack.c.b16 %v570, %v568
      %v755 = vpack.c.b16 %v573, %v571
      %v756 = vpack.c.b16 %v574, %v572
      %v757 = vpack.c.b16 %v577, %v575
      %v758 = vpack.c.b16 %v578, %v576
      %v759 = vpack.c.b16 %v581, %v579
      %v760 = vpack.c.b16 %v582, %v580
      %v761 = vpack.c.b16 %v585, %v583
      %v762 = vpack.c.b16 %v586, %v584
      %v763 = vpack.c.b16 %v589, %v587
      %v764 = vpack.c.b16 %v590, %v588
      %v765 = vpack.c.b16 %v593, %v591
      %v766 = vpack.c.b16 %v594, %v592
      %v767 = vpack.c.b16 %v597, %v595
      %v768 = vpack.c.b16 %v598, %v596
      %v769 = vpack.c.b16 %v601, %v599
      %v770 = vpack.c.b16 %v602, %v600
      %v771 = vpack.c.b16 %v605, %v603
      %v772 = vpack.c.b16 %v606, %v604
      %v773 = vpack.c.b16 %v609, %v607
      %v774 = vpack.c.b16 %v610, %v608
      %v775 = vpack.c.b16 %v613, %v611
      %v776 = vpack.c.b16 %v614, %v612
      %v777 = vpack.c.b16 %v617, %v615
      %v778 = vpack.c.b16 %v618, %v616
      %v779 = vpack.c.b16 %v621, %v619
      %v780 = vpack.c.b16 %v622, %v620
      %v781 = vpack.c.b16 %v625, %v623
      %v782 = vpack.c.b16 %v626, %v624
      %v783 = vpack.c.b16 %v629, %v627
      %v784 = vpack.c.b16 %v630, %v628
      %v785 = vpack.c.b16 %v633, %v631
      %v786 = vpack.c.b16 %v634, %v632
      %v787 = vpack.c.b16 %v637, %v635
      %v788 = vpack.c.b16 %v638, %v636
      %v789 = vpack.c.b16 %v641, %v639
      %v790 = vpack.c.b16 %v642, %v640
      %v791 = vpack.c.b16 %v645, %v643
      %v792 = vpack.c.b16 %v646, %v644
      %v793 = vpack.c.b16 %v649, %v647
      %v794 = vpack.c.b16 %v650, %v648
      %v795 = vpack.c.b16 %v653, %v651
      %v796 = vpack.c.b16 %v654, %v652
      %v797 = vpack.c.b16 %v657, %v655
      %v798 = vpack.c.b16 %v658, %v656
      %v799 = vpack.c.b16 %v661, %v659
      %v800 = vpack.c.b16 %v662, %v660
      %v801 = vpack.c.b16 %v665, %v663
      %v802 = vpack.c.b16 %v666, %v664
      %v803 = vpack.c.b16 %v669, %v667
      %v804 = vpack.c.b16 %v670, %v668
      %v805 = vpack.c.b16 %v673, %v671
      %v806 = vpack.c.b16 %v674, %v672
      %v807 = vpack.c.b16 %v677, %v675
      %v808 = vpack.c.b16 %v678, %v676
      %v809 = vpack.c.b16 %v681, %v679
      %v810 = vpack.c.b16 %v682, %v680
      %v811 = vpack.c.b16 %v685, %v683
      %v812 = vpack.c.b16 %v686, %v684
      %v813 = vpack.c.b16 %v689, %v687
      %v814 = vpack.c.b16 %v690, %v688
      %v815 = vpack.c.b16 %v693, %v691
      %v816 = vpack.c.b16 %v694, %v692
      %v817 = vpack.c.b16 %v697, %v695
      %v818 = vpack.c.b16 %v698, %v696
      %v819 = vpack.c.b16 %v701, %v699
      %v820 = vpack.c.b16 %v702, %v700
      %v821 = vpack.c.b16 %v705, %v703
      %v822 = vpack.c.b16 %v706, %v704
      %v823 = vpack.c.b16 %v709, %v707
      %v824 = vpack.c.b16 %v710, %v708
      %v825 = vpack.c.b16 %v713, %v711
      %v826 = vpack.c.b16 %v714, %v712
      %v827 = vpack.c.b16 %v717, %v715
      %v828 = vpack.c.b16 %v718, %v716
      %v829 = vpack.c.b16 %v721, %v719
      %v830 = vpack.c.b16 %v722, %v720
      %v904 = vunpack.c.l.b16 %v376
      %v905 = vunpack.c.l.b16 %v377
      %v906 = vunpack.c.l.b16 %v378
      %v907 = vunpack.c.l.b16 %v379
      %v908 = vunpack.c.l.b16 %v380
      %v909 = vunpack.c.l.b16 %v381
      %v910 = vunpack.c.l.b16 %v382
      %v911 = vunpack.c.l.b16 %v383
      %v912 = vunpack.c.l.b16 %v384
      %v913 = vunpack.c.l.b16 %v385
      %v914 = vunpack.c.l.b16 %v386
      %v915 = vunpack.c.l.b16 %v387
      %v916 = vunpack.c.l.b16 %v388
      %v917 = vunpack.c.l.b16 %v389
      %v918 = vunpack.c.l.b16 %v390
      %v919 = vunpack.c.l.b16 %v391
      %v920 = vunpack.c.l.b16 %v392
      %v921 = vunpack.c.l.b16 %v393
      %v922 = vunpack.c.l.b16 %v394
      %v923 = vpack.c.b16 %v905, %v904
      %v924 = vpack.c.b16 %v907, %v906
      %v925 = vpack.c.b16 %v909, %v908
      %v926 = vpack.c.b16 %v911, %v910
      %v927 = vpack.c.b16 %v913, %v912
      %v928 = vpack.c.b16 %v915, %v914
      %v929 = vpack.c.b16 %v917, %v916
      %v930 = vpack.c.b16 %v919, %v918
      %v931 = vpack.c.b16 %v921, %v920
      %v932 = vpack.c.b16 %v922, %v922
      %vm942 = vcmask 154624
      %v944 = vsel %vm942, %v724, 0
      %v947 = vsel %vm942, %v726, 0
      %v950 = vsel %vm942, %v728, 0
      %v953 = vsel %vm942, %v730, 0
      %v956 = vsel %vm942, %v732, 0
      %v959 = vsel %vm942, %v734, 0
      %v962 = vsel %vm942, %v736, 0
      %v965 = vsel %vm942, %v738, 0
      %v968 = vsel %vm942, %v740, 0
      %v971 = vsel %vm942, %v742, 0
      %v974 = vsel %vm942, %v744, 0
      %v977 = vsel %vm942, %v746, 0
      %v980 = vsel %vm942, %v748, 0
      %v983 = vsel %vm942, %v750, 0
      %v986 = vsel %vm942, %v752, 0
      %v989 = vsel %vm942, %v754, 0
      %v992 = vsel %vm942, %v756, 0
      %v995 = vsel %vm942, %v758, 0
      %v998 = vsel %vm942, %v760, 0
      %v1001 = vsel %vm942, %v762, 0
      %v1004 = vsel %vm942, %v764, 0
      %v1007 = vsel %vm942, %v766, 0
      %v1010 = vsel %vm942, %v768, 0
      %v1013 = vsel %vm942, %v770, 0
      %v1016 = vsel %vm942, %v772, 0
      %v1019 = vsel %vm942, %v774, 0
      %v1022 = vsel %vm942, %v776, 0
      %v1025 = vsel %vm942, %v778, 0
      %v1028 = vsel %vm942, %v780, 0
      %v1031 = vsel %vm942, %v782, 0
      %v1034 = vsel %vm942, %v784, 0
      %v1037 = vsel %vm942, %v786, 0
      %v1040 = vsel %vm942, %v788, 0
      %v1043 = vsel %vm942, %v790, 0
      %v1046 = vsel %vm942, %v792, 0
      %v1049 = vsel %vm942, %v794, 0
      %v1052 = vsel %vm942, %v796, 0
      %v1055 = vsel %vm942, %v798, 0
      %v1058 = vsel %vm942, %v800, 0
      %v1061 = vsel %vm942, %v802, 0
      %v1064 = vsel %vm942, %v804, 0
      %v1067 = vsel %vm942, %v806, 0
      %v1070 = vsel %vm942, %v808, 0
      %v1073 = vsel %vm942, %v810, 0
      %v1076 = vsel %vm942, %v812, 0
      %v1079 = vsel %vm942, %v814, 0
      %v1082 = vsel %vm942, %v816, 0
      %v1085 = vsel %vm942, %v818, 0
      %v1088 = vsel %vm942, %v820, 0
      %v1091 = vsel %vm942, %v822, 0
      %v1094 = vsel %vm942, %v824, 0
      %v1097 = vsel %vm942, %v826, 0
      %v1100 = vsel %vm942, %v828, 0
      %v1103 = vsel %vm942, %v830, 0
      %vm1105 = vcmask 1040384
      %vm1106 = vcmask 1041408
      %v1107 = vsel %vm1105, 4294967295, 65535
      %v1108 = vsel %vm1106, %v1107, 0
      %v1110 = vand.u32 %v932, %v1108
      %1112 = vmatpush.bf16.msra.mxu0 %v930
      %1113 = vmatpush.bf16.msra.mxu0 %v929
      %1114 = vmatpush.bf16.msra.mxu0 %v928
      %1115 = vmatpush.bf16.msra.mxu0 %v927
      %1116 = vmatpush.bf16.msra.mxu0 %v926
      %1117 = vmatpush.bf16.msra.mxu0 %v925
      %1118 = vmatpush.bf16.msra.mxu0 %v924
      %1119 = vmatpush.bf16.msra.mxu0 %v923
      %1120 = vmatmul.bf16.gmra.mxu0 %v723
      %v1121 = vpop.f32.mrf.mxu0
      %v1122 = vadd.f32 %v397, %v1121
      %v1123 = vpop.f32.mrf.mxu0
      %v1124 = vadd.f32 %v397, %v1123
      %1125 = vmatmul.bf16.gmra.mxu0 %v725
      %v1126 = vpop.f32.mrf.mxu0
      %v1127 = vadd.f32 %v397, %v1126
      %v1128 = vpop.f32.mrf.mxu0
      %v1129 = vadd.f32 %v397, %v1128
      %1130 = vmatmul.bf16.gmra.mxu0 %v727
      %v1131 = vpop.f32.mrf.mxu0
      %v1132 = vadd.f32 %v397, %v1131
      %v1133 = vpop.f32.mrf.mxu0
      %v1134 = vadd.f32 %v397, %v1133
      %1135 = vmatmul.bf16.gmra.mxu0 %v729
      %v1136 = vpop.f32.mrf.mxu0
      %v1137 = vadd.f32 %v397, %v1136
      %v1138 = vpop.f32.mrf.mxu0
      %v1139 = vadd.f32 %v397, %v1138
      %1140 = vmatmul.bf16.gmra.mxu0 %v731
      %v1141 = vpop.f32.mrf.mxu0
      %v1142 = vadd.f32 %v397, %v1141
      %v1143 = vpop.f32.mrf.mxu0
      %v1144 = vadd.f32 %v397, %v1143
      %1145 = vmatmul.bf16.gmra.mxu0 %v733
      %v1146 = vpop.f32.mrf.mxu0
      %v1147 = vadd.f32 %v397, %v1146
      %v1148 = vpop.f32.mrf.mxu0
      %v1149 = vadd.f32 %v397, %v1148
      %1150 = vmatmul.bf16.gmra.mxu0 %v735
      %v1151 = vpop.f32.mrf.mxu0
      %v1152 = vadd.f32 %v397, %v1151
      %v1153 = vpop.f32.mrf.mxu0
      %v1154 = vadd.f32 %v397, %v1153
      %1155 = vmatmul.bf16.gmra.mxu0 %v737
      %v1156 = vpop.f32.mrf.mxu0
      %v1157 = vadd.f32 %v397, %v1156
      %v1158 = vpop.f32.mrf.mxu0
      %v1159 = vadd.f32 %v397, %v1158
      %1160 = vmatmul.bf16.gmra.mxu0 %v739
      %v1161 = vpop.f32.mrf.mxu0
      %v1162 = vadd.f32 %v397, %v1161
      %v1163 = vpop.f32.mrf.mxu0
      %v1164 = vadd.f32 %v397, %v1163
      %1165 = vmatmul.bf16.gmra.mxu0 %v741
      %v1166 = vpop.f32.mrf.mxu0
      %v1167 = vadd.f32 %v397, %v1166
      %v1168 = vpop.f32.mrf.mxu0
      %v1169 = vadd.f32 %v397, %v1168
      %1170 = vmatmul.bf16.gmra.mxu0 %v743
      %v1171 = vpop.f32.mrf.mxu0
      %v1172 = vadd.f32 %v397, %v1171
      %v1173 = vpop.f32.mrf.mxu0
      %v1174 = vadd.f32 %v397, %v1173
      %1175 = vmatmul.bf16.gmra.mxu0 %v745
      %v1176 = vpop.f32.mrf.mxu0
      %v1177 = vadd.f32 %v397, %v1176
      %v1178 = vpop.f32.mrf.mxu0
      %v1179 = vadd.f32 %v397, %v1178
      %1180 = vmatmul.bf16.gmra.mxu0 %v747
      %v1181 = vpop.f32.mrf.mxu0
      %v1182 = vadd.f32 %v397, %v1181
      %v1183 = vpop.f32.mrf.mxu0
      %v1184 = vadd.f32 %v397, %v1183
      %1185 = vmatmul.bf16.gmra.mxu0 %v749
      %v1186 = vpop.f32.mrf.mxu0
      %v1187 = vadd.f32 %v397, %v1186
      %v1188 = vpop.f32.mrf.mxu0
      %v1189 = vadd.f32 %v397, %v1188
      %1190 = vmatmul.bf16.gmra.mxu0 %v751
      %v1191 = vpop.f32.mrf.mxu0
      %v1192 = vadd.f32 %v397, %v1191
      %v1193 = vpop.f32.mrf.mxu0
      %v1194 = vadd.f32 %v397, %v1193
      %1195 = vmatmul.bf16.gmra.mxu0 %v753
      %v1196 = vpop.f32.mrf.mxu0
      %v1197 = vadd.f32 %v397, %v1196
      %v1198 = vpop.f32.mrf.mxu0
      %v1199 = vadd.f32 %v397, %v1198
      %1200 = vmatmul.bf16.gmra.mxu0 %v755
      %v1201 = vpop.f32.mrf.mxu0
      %v1202 = vadd.f32 %v397, %v1201
      %v1203 = vpop.f32.mrf.mxu0
      %v1204 = vadd.f32 %v397, %v1203
      %1205 = vmatmul.bf16.gmra.mxu0 %v757
      %v1206 = vpop.f32.mrf.mxu0
      %v1207 = vadd.f32 %v397, %v1206
      %v1208 = vpop.f32.mrf.mxu0
      %v1209 = vadd.f32 %v397, %v1208
      %1210 = vmatmul.bf16.gmra.mxu0 %v759
      %v1211 = vpop.f32.mrf.mxu0
      %v1212 = vadd.f32 %v397, %v1211
      %v1213 = vpop.f32.mrf.mxu0
      %v1214 = vadd.f32 %v397, %v1213
      %1215 = vmatmul.bf16.gmra.mxu0 %v761
      %v1216 = vpop.f32.mrf.mxu0
      %v1217 = vadd.f32 %v397, %v1216
      %v1218 = vpop.f32.mrf.mxu0
      %v1219 = vadd.f32 %v397, %v1218
      %1220 = vmatmul.bf16.gmra.mxu0 %v763
      %v1221 = vpop.f32.mrf.mxu0
      %v1222 = vadd.f32 %v397, %v1221
      %v1223 = vpop.f32.mrf.mxu0
      %v1224 = vadd.f32 %v397, %v1223
      %1225 = vmatmul.bf16.gmra.mxu0 %v765
      %v1226 = vpop.f32.mrf.mxu0
      %v1227 = vadd.f32 %v397, %v1226
      %v1228 = vpop.f32.mrf.mxu0
      %v1229 = vadd.f32 %v397, %v1228
      %1230 = vmatmul.bf16.gmra.mxu0 %v767
      %v1231 = vpop.f32.mrf.mxu0
      %v1232 = vadd.f32 %v397, %v1231
      %v1233 = vpop.f32.mrf.mxu0
      %v1234 = vadd.f32 %v397, %v1233
      %1235 = vmatmul.bf16.gmra.mxu0 %v769
      %v1236 = vpop.f32.mrf.mxu0
      %v1237 = vadd.f32 %v397, %v1236
      %v1238 = vpop.f32.mrf.mxu0
      %v1239 = vadd.f32 %v397, %v1238
      %1240 = vmatmul.bf16.gmra.mxu0 %v771
      %v1241 = vpop.f32.mrf.mxu0
      %v1242 = vadd.f32 %v397, %v1241
      %v1243 = vpop.f32.mrf.mxu0
      %v1244 = vadd.f32 %v397, %v1243
      %1245 = vmatmul.bf16.gmra.mxu0 %v773
      %v1246 = vpop.f32.mrf.mxu0
      %v1247 = vadd.f32 %v397, %v1246
      %v1248 = vpop.f32.mrf.mxu0
      %v1249 = vadd.f32 %v397, %v1248
      %1250 = vmatmul.bf16.gmra.mxu0 %v775
      %v1251 = vpop.f32.mrf.mxu0
      %v1252 = vadd.f32 %v397, %v1251
      %v1253 = vpop.f32.mrf.mxu0
      %v1254 = vadd.f32 %v397, %v1253
      %1255 = vmatmul.bf16.gmra.mxu0 %v777
      %v1256 = vpop.f32.mrf.mxu0
      %v1257 = vadd.f32 %v397, %v1256
      %v1258 = vpop.f32.mrf.mxu0
      %v1259 = vadd.f32 %v397, %v1258
      %1260 = vmatmul.bf16.gmra.mxu0 %v779
      %v1261 = vpop.f32.mrf.mxu0
      %v1262 = vadd.f32 %v397, %v1261
      %v1263 = vpop.f32.mrf.mxu0
      %v1264 = vadd.f32 %v397, %v1263
      %1265 = vmatmul.bf16.gmra.mxu0 %v781
      %v1266 = vpop.f32.mrf.mxu0
      %v1267 = vadd.f32 %v397, %v1266
      %v1268 = vpop.f32.mrf.mxu0
      %v1269 = vadd.f32 %v397, %v1268
      %1270 = vmatmul.bf16.gmra.mxu0 %v783
      %v1271 = vpop.f32.mrf.mxu0
      %v1272 = vadd.f32 %v397, %v1271
      %v1273 = vpop.f32.mrf.mxu0
      %v1274 = vadd.f32 %v397, %v1273
      %1275 = vmatmul.bf16.gmra.mxu0 %v785
      %v1276 = vpop.f32.mrf.mxu0
      %v1277 = vadd.f32 %v397, %v1276
      %v1278 = vpop.f32.mrf.mxu0
      %v1279 = vadd.f32 %v397, %v1278
      %1280 = vmatmul.bf16.gmra.mxu0 %v787
      %v1281 = vpop.f32.mrf.mxu0
      %v1282 = vadd.f32 %v397, %v1281
      %v1283 = vpop.f32.mrf.mxu0
      %v1284 = vadd.f32 %v397, %v1283
      %1285 = vmatmul.bf16.gmra.mxu0 %v789
      %v1286 = vpop.f32.mrf.mxu0
      %v1287 = vadd.f32 %v397, %v1286
      %v1288 = vpop.f32.mrf.mxu0
      %v1289 = vadd.f32 %v397, %v1288
      %1290 = vmatmul.bf16.gmra.mxu0 %v791
      %v1291 = vpop.f32.mrf.mxu0
      %v1292 = vadd.f32 %v397, %v1291
      %v1293 = vpop.f32.mrf.mxu0
      %v1294 = vadd.f32 %v397, %v1293
      %1295 = vmatmul.bf16.gmra.mxu0 %v793
      %v1296 = vpop.f32.mrf.mxu0
      %v1297 = vadd.f32 %v397, %v1296
      %v1298 = vpop.f32.mrf.mxu0
      %v1299 = vadd.f32 %v397, %v1298
      %1300 = vmatmul.bf16.gmra.mxu0 %v795
      %v1301 = vpop.f32.mrf.mxu0
      %v1302 = vadd.f32 %v397, %v1301
      %v1303 = vpop.f32.mrf.mxu0
      %v1304 = vadd.f32 %v397, %v1303
      %1305 = vmatmul.bf16.gmra.mxu0 %v797
      %v1306 = vpop.f32.mrf.mxu0
      %v1307 = vadd.f32 %v397, %v1306
      %v1308 = vpop.f32.mrf.mxu0
      %v1309 = vadd.f32 %v397, %v1308
      %1310 = vmatmul.bf16.gmra.mxu0 %v799
      %v1311 = vpop.f32.mrf.mxu0
      %v1312 = vadd.f32 %v397, %v1311
      %v1313 = vpop.f32.mrf.mxu0
      %v1314 = vadd.f32 %v397, %v1313
      %1315 = vmatmul.bf16.gmra.mxu0 %v801
      %v1316 = vpop.f32.mrf.mxu0
      %v1317 = vadd.f32 %v397, %v1316
      %v1318 = vpop.f32.mrf.mxu0
      %v1319 = vadd.f32 %v397, %v1318
      %1320 = vmatmul.bf16.gmra.mxu0 %v803
      %v1321 = vpop.f32.mrf.mxu0
      %v1322 = vadd.f32 %v397, %v1321
      %v1323 = vpop.f32.mrf.mxu0
      %v1324 = vadd.f32 %v397, %v1323
      %1325 = vmatmul.bf16.gmra.mxu0 %v805
      %v1326 = vpop.f32.mrf.mxu0
      %v1327 = vadd.f32 %v397, %v1326
      %v1328 = vpop.f32.mrf.mxu0
      %v1329 = vadd.f32 %v397, %v1328
      %1330 = vmatmul.bf16.gmra.mxu0 %v807
      %v1331 = vpop.f32.mrf.mxu0
      %v1332 = vadd.f32 %v397, %v1331
      %v1333 = vpop.f32.mrf.mxu0
      %v1334 = vadd.f32 %v397, %v1333
      %1335 = vmatmul.bf16.gmra.mxu0 %v809
      %v1336 = vpop.f32.mrf.mxu0
      %v1337 = vadd.f32 %v397, %v1336
      %v1338 = vpop.f32.mrf.mxu0
      %v1339 = vadd.f32 %v397, %v1338
      %1340 = vmatmul.bf16.gmra.mxu0 %v811
      %v1341 = vpop.f32.mrf.mxu0
      %v1342 = vadd.f32 %v397, %v1341
      %v1343 = vpop.f32.mrf.mxu0
      %v1344 = vadd.f32 %v397, %v1343
      %1345 = vmatmul.bf16.gmra.mxu0 %v813
      %v1346 = vpop.f32.mrf.mxu0
      %v1347 = vadd.f32 %v397, %v1346
      %v1348 = vpop.f32.mrf.mxu0
      %v1349 = vadd.f32 %v397, %v1348
      %1350 = vmatmul.bf16.gmra.mxu0 %v815
      %v1351 = vpop.f32.mrf.mxu0
      %v1352 = vadd.f32 %v397, %v1351
      %v1353 = vpop.f32.mrf.mxu0
      %v1354 = vadd.f32 %v397, %v1353
      %1355 = vmatmul.bf16.gmra.mxu0 %v817
      %v1356 = vpop.f32.mrf.mxu0
      %v1357 = vadd.f32 %v397, %v1356
      %v1358 = vpop.f32.mrf.mxu0
      %v1359 = vadd.f32 %v397, %v1358
      %1360 = vmatmul.bf16.gmra.mxu0 %v819
      %v1361 = vpop.f32.mrf.mxu0
      %v1362 = vadd.f32 %v397, %v1361
      %v1363 = vpop.f32.mrf.mxu0
      %v1364 = vadd.f32 %v397, %v1363
      %1365 = vmatmul.bf16.gmra.mxu0 %v821
      %v1366 = vpop.f32.mrf.mxu0
      %v1367 = vadd.f32 %v397, %v1366
      %v1368 = vpop.f32.mrf.mxu0
      %v1369 = vadd.f32 %v397, %v1368
      %1370 = vmatmul.bf16.gmra.mxu0 %v823
      %v1371 = vpop.f32.mrf.mxu0
      %v1372 = vadd.f32 %v397, %v1371
      %v1373 = vpop.f32.mrf.mxu0
      %v1374 = vadd.f32 %v397, %v1373
      %1375 = vmatmul.bf16.gmra.mxu0 %v825
      %v1376 = vpop.f32.mrf.mxu0
      %v1377 = vadd.f32 %v397, %v1376
      %v1378 = vpop.f32.mrf.mxu0
      %v1379 = vadd.f32 %v397, %v1378
      %1380 = vmatmul.bf16.gmra.mxu0 %v827
      %v1381 = vpop.f32.mrf.mxu0
      %v1382 = vadd.f32 %v397, %v1381
      %v1383 = vpop.f32.mrf.mxu0
      %v1384 = vadd.f32 %v397, %v1383
      %1385 = vmatmul.bf16.gmra.mxu0 %v829
      %v1386 = vpop.f32.mrf.mxu0
      %v1387 = vadd.f32 %v397, %v1386
      %v1388 = vpop.f32.mrf.mxu0
      %v1389 = vadd.f32 %v397, %v1388
      %1390 = vdwg.mxu0
      %1391 = vmatpush.bf16.msra.mxu0 0
      %1392 = vmatpush.bf16.msra.mxu0 0
      %1393 = vmatpush.bf16.msra.mxu0 0
      %1394 = vmatpush.bf16.msra.mxu0 0
      %1395 = vmatpush.bf16.msra.mxu0 0
      %1396 = vmatpush.bf16.msra.mxu0 0
      %1397 = vmatpush.bf16.msra.mxu0 %v1110
      %1398 = vmatpush.bf16.msra.mxu0 %v931
      %1399 = vmatmul.bf16.gmra.mxu0 %v944
      %v1400 = vpop.f32.mrf.mxu0
      %v1401 = vadd.f32 %v1122, %v1400
      %v1402 = vpop.f32.mrf.mxu0
      %v1403 = vadd.f32 %v1124, %v1402
      %1404 = vmatmul.bf16.gmra.mxu0 %v947
      %v1405 = vpop.f32.mrf.mxu0
      %v1406 = vadd.f32 %v1127, %v1405
      %v1407 = vpop.f32.mrf.mxu0
      %v1408 = vadd.f32 %v1129, %v1407
      %1409 = vmatmul.bf16.gmra.mxu0 %v950
      %v1410 = vpop.f32.mrf.mxu0
      %v1411 = vadd.f32 %v1132, %v1410
      %v1412 = vpop.f32.mrf.mxu0
      %v1413 = vadd.f32 %v1134, %v1412
      %1414 = vmatmul.bf16.gmra.mxu0 %v953
      %v1415 = vpop.f32.mrf.mxu0
      %v1416 = vadd.f32 %v1137, %v1415
      %v1417 = vpop.f32.mrf.mxu0
      %v1418 = vadd.f32 %v1139, %v1417
      %1419 = vmatmul.bf16.gmra.mxu0 %v956
      %v1420 = vpop.f32.mrf.mxu0
      %v1421 = vadd.f32 %v1142, %v1420
      %v1422 = vpop.f32.mrf.mxu0
      %v1423 = vadd.f32 %v1144, %v1422
      %1424 = vmatmul.bf16.gmra.mxu0 %v959
      %v1425 = vpop.f32.mrf.mxu0
      %v1426 = vadd.f32 %v1147, %v1425
      %v1427 = vpop.f32.mrf.mxu0
      %v1428 = vadd.f32 %v1149, %v1427
      %1429 = vmatmul.bf16.gmra.mxu0 %v962
      %v1430 = vpop.f32.mrf.mxu0
      %v1431 = vadd.f32 %v1152, %v1430
      %v1432 = vpop.f32.mrf.mxu0
      %v1433 = vadd.f32 %v1154, %v1432
      %1434 = vmatmul.bf16.gmra.mxu0 %v965
      %v1435 = vpop.f32.mrf.mxu0
      %v1436 = vadd.f32 %v1157, %v1435
      %v1437 = vpop.f32.mrf.mxu0
      %v1438 = vadd.f32 %v1159, %v1437
      %1439 = vmatmul.bf16.gmra.mxu0 %v968
      %v1440 = vpop.f32.mrf.mxu0
      %v1441 = vadd.f32 %v1162, %v1440
      %v1442 = vpop.f32.mrf.mxu0
      %v1443 = vadd.f32 %v1164, %v1442
      %1444 = vmatmul.bf16.gmra.mxu0 %v971
      %v1445 = vpop.f32.mrf.mxu0
      %v1446 = vadd.f32 %v1167, %v1445
      %v1447 = vpop.f32.mrf.mxu0
      %v1448 = vadd.f32 %v1169, %v1447
      %1449 = vmatmul.bf16.gmra.mxu0 %v974
      %v1450 = vpop.f32.mrf.mxu0
      %v1451 = vadd.f32 %v1172, %v1450
      %v1452 = vpop.f32.mrf.mxu0
      %v1453 = vadd.f32 %v1174, %v1452
      %1454 = vmatmul.bf16.gmra.mxu0 %v977
      %v1455 = vpop.f32.mrf.mxu0
      %v1456 = vadd.f32 %v1177, %v1455
      %v1457 = vpop.f32.mrf.mxu0
      %v1458 = vadd.f32 %v1179, %v1457
      %1459 = vmatmul.bf16.gmra.mxu0 %v980
      %v1460 = vpop.f32.mrf.mxu0
      %v1461 = vadd.f32 %v1182, %v1460
      %v1462 = vpop.f32.mrf.mxu0
      %v1463 = vadd.f32 %v1184, %v1462
      %1464 = vmatmul.bf16.gmra.mxu0 %v983
      %v1465 = vpop.f32.mrf.mxu0
      %v1466 = vadd.f32 %v1187, %v1465
      %v1467 = vpop.f32.mrf.mxu0
      %v1468 = vadd.f32 %v1189, %v1467
      %1469 = vmatmul.bf16.gmra.mxu0 %v986
      %v1470 = vpop.f32.mrf.mxu0
      %v1471 = vadd.f32 %v1192, %v1470
      %v1472 = vpop.f32.mrf.mxu0
      %v1473 = vadd.f32 %v1194, %v1472
      %1474 = vmatmul.bf16.gmra.mxu0 %v989
      %v1475 = vpop.f32.mrf.mxu0
      %v1476 = vadd.f32 %v1197, %v1475
      %v1477 = vpop.f32.mrf.mxu0
      %v1478 = vadd.f32 %v1199, %v1477
      %1479 = vmatmul.bf16.gmra.mxu0 %v992
      %v1480 = vpop.f32.mrf.mxu0
      %v1481 = vadd.f32 %v1202, %v1480
      %v1482 = vpop.f32.mrf.mxu0
      %v1483 = vadd.f32 %v1204, %v1482
      %1484 = vmatmul.bf16.gmra.mxu0 %v995
      %v1485 = vpop.f32.mrf.mxu0
      %v1486 = vadd.f32 %v1207, %v1485
      %v1487 = vpop.f32.mrf.mxu0
      %v1488 = vadd.f32 %v1209, %v1487
      %1489 = vmatmul.bf16.gmra.mxu0 %v998
      %v1490 = vpop.f32.mrf.mxu0
      %v1491 = vadd.f32 %v1212, %v1490
      %v1492 = vpop.f32.mrf.mxu0
      %v1493 = vadd.f32 %v1214, %v1492
      %1494 = vmatmul.bf16.gmra.mxu0 %v1001
      %v1495 = vpop.f32.mrf.mxu0
      %v1496 = vadd.f32 %v1217, %v1495
      %v1497 = vpop.f32.mrf.mxu0
      %v1498 = vadd.f32 %v1219, %v1497
      %1499 = vmatmul.bf16.gmra.mxu0 %v1004
      %v1500 = vpop.f32.mrf.mxu0
      %v1501 = vadd.f32 %v1222, %v1500
      %v1502 = vpop.f32.mrf.mxu0
      %v1503 = vadd.f32 %v1224, %v1502
      %1504 = vmatmul.bf16.gmra.mxu0 %v1007
      %v1505 = vpop.f32.mrf.mxu0
      %v1506 = vadd.f32 %v1227, %v1505
      %v1507 = vpop.f32.mrf.mxu0
      %v1508 = vadd.f32 %v1229, %v1507
      %1509 = vmatmul.bf16.gmra.mxu0 %v1010
      %v1510 = vpop.f32.mrf.mxu0
      %v1511 = vadd.f32 %v1232, %v1510
      %v1512 = vpop.f32.mrf.mxu0
      %v1513 = vadd.f32 %v1234, %v1512
      %1514 = vmatmul.bf16.gmra.mxu0 %v1013
      %v1515 = vpop.f32.mrf.mxu0
      %v1516 = vadd.f32 %v1237, %v1515
      %v1517 = vpop.f32.mrf.mxu0
      %v1518 = vadd.f32 %v1239, %v1517
      %1519 = vmatmul.bf16.gmra.mxu0 %v1016
      %v1520 = vpop.f32.mrf.mxu0
      %v1521 = vadd.f32 %v1242, %v1520
      %v1522 = vpop.f32.mrf.mxu0
      %v1523 = vadd.f32 %v1244, %v1522
      %1524 = vmatmul.bf16.gmra.mxu0 %v1019
      %v1525 = vpop.f32.mrf.mxu0
      %v1526 = vadd.f32 %v1247, %v1525
      %v1527 = vpop.f32.mrf.mxu0
      %v1528 = vadd.f32 %v1249, %v1527
      %1529 = vmatmul.bf16.gmra.mxu0 %v1022
      %v1530 = vpop.f32.mrf.mxu0
      %v1531 = vadd.f32 %v1252, %v1530
      %v1532 = vpop.f32.mrf.mxu0
      %v1533 = vadd.f32 %v1254, %v1532
      %1534 = vmatmul.bf16.gmra.mxu0 %v1025
      %v1535 = vpop.f32.mrf.mxu0
      %v1536 = vadd.f32 %v1257, %v1535
      %v1537 = vpop.f32.mrf.mxu0
      %v1538 = vadd.f32 %v1259, %v1537
      %1539 = vmatmul.bf16.gmra.mxu0 %v1028
      %v1540 = vpop.f32.mrf.mxu0
      %v1541 = vadd.f32 %v1262, %v1540
      %v1542 = vpop.f32.mrf.mxu0
      %v1543 = vadd.f32 %v1264, %v1542
      %1544 = vmatmul.bf16.gmra.mxu0 %v1031
      %v1545 = vpop.f32.mrf.mxu0
      %v1546 = vadd.f32 %v1267, %v1545
      %v1547 = vpop.f32.mrf.mxu0
      %v1548 = vadd.f32 %v1269, %v1547
      %1549 = vmatmul.bf16.gmra.mxu0 %v1034
      %v1550 = vpop.f32.mrf.mxu0
      %v1551 = vadd.f32 %v1272, %v1550
      %v1552 = vpop.f32.mrf.mxu0
      %v1553 = vadd.f32 %v1274, %v1552
      %1554 = vmatmul.bf16.gmra.mxu0 %v1037
      %v1555 = vpop.f32.mrf.mxu0
      %v1556 = vadd.f32 %v1277, %v1555
      %v1557 = vpop.f32.mrf.mxu0
      %v1558 = vadd.f32 %v1279, %v1557
      %1559 = vmatmul.bf16.gmra.mxu0 %v1040
      %v1560 = vpop.f32.mrf.mxu0
      %v1561 = vadd.f32 %v1282, %v1560
      %v1562 = vpop.f32.mrf.mxu0
      %v1563 = vadd.f32 %v1284, %v1562
      %1564 = vmatmul.bf16.gmra.mxu0 %v1043
      %v1565 = vpop.f32.mrf.mxu0
      %v1566 = vadd.f32 %v1287, %v1565
      %v1567 = vpop.f32.mrf.mxu0
      %v1568 = vadd.f32 %v1289, %v1567
      %1569 = vmatmul.bf16.gmra.mxu0 %v1046
      %v1570 = vpop.f32.mrf.mxu0
      %v1571 = vadd.f32 %v1292, %v1570
      %v1572 = vpop.f32.mrf.mxu0
      %v1573 = vadd.f32 %v1294, %v1572
      %1574 = vmatmul.bf16.gmra.mxu0 %v1049
      %v1575 = vpop.f32.mrf.mxu0
      %v1576 = vadd.f32 %v1297, %v1575
      %v1577 = vpop.f32.mrf.mxu0
      %v1578 = vadd.f32 %v1299, %v1577
      %1579 = vmatmul.bf16.gmra.mxu0 %v1052
      %v1580 = vpop.f32.mrf.mxu0
      %v1581 = vadd.f32 %v1302, %v1580
      %v1582 = vpop.f32.mrf.mxu0
      %v1583 = vadd.f32 %v1304, %v1582
      %1584 = vmatmul.bf16.gmra.mxu0 %v1055
      %v1585 = vpop.f32.mrf.mxu0
      %v1586 = vadd.f32 %v1307, %v1585
      %v1587 = vpop.f32.mrf.mxu0
      %v1588 = vadd.f32 %v1309, %v1587
      %1589 = vmatmul.bf16.gmra.mxu0 %v1058
      %v1590 = vpop.f32.mrf.mxu0
      %v1591 = vadd.f32 %v1312, %v1590
      %v1592 = vpop.f32.mrf.mxu0
      %v1593 = vadd.f32 %v1314, %v1592
      %1594 = vmatmul.bf16.gmra.mxu0 %v1061
      %v1595 = vpop.f32.mrf.mxu0
      %v1596 = vadd.f32 %v1317, %v1595
      %v1597 = vpop.f32.mrf.mxu0
      %v1598 = vadd.f32 %v1319, %v1597
      %1599 = vmatmul.bf16.gmra.mxu0 %v1064
      %v1600 = vpop.f32.mrf.mxu0
      %v1601 = vadd.f32 %v1322, %v1600
      %v1602 = vpop.f32.mrf.mxu0
      %v1603 = vadd.f32 %v1324, %v1602
      %1604 = vmatmul.bf16.gmra.mxu0 %v1067
      %v1605 = vpop.f32.mrf.mxu0
      %v1606 = vadd.f32 %v1327, %v1605
      %v1607 = vpop.f32.mrf.mxu0
      %v1608 = vadd.f32 %v1329, %v1607
      %1609 = vmatmul.bf16.gmra.mxu0 %v1070
      %v1610 = vpop.f32.mrf.mxu0
      %v1611 = vadd.f32 %v1332, %v1610
      %v1612 = vpop.f32.mrf.mxu0
      %v1613 = vadd.f32 %v1334, %v1612
      %1614 = vmatmul.bf16.gmra.mxu0 %v1073
      %v1615 = vpop.f32.mrf.mxu0
      %v1616 = vadd.f32 %v1337, %v1615
      %v1617 = vpop.f32.mrf.mxu0
      %v1618 = vadd.f32 %v1339, %v1617
      %1619 = vmatmul.bf16.gmra.mxu0 %v1076
      %v1620 = vpop.f32.mrf.mxu0
      %v1621 = vadd.f32 %v1342, %v1620
      %v1622 = vpop.f32.mrf.mxu0
      %v1623 = vadd.f32 %v1344, %v1622
      %1624 = vmatmul.bf16.gmra.mxu0 %v1079
      %v1625 = vpop.f32.mrf.mxu0
      %v1626 = vadd.f32 %v1347, %v1625
      %v1627 = vpop.f32.mrf.mxu0
      %v1628 = vadd.f32 %v1349, %v1627
      %1629 = vmatmul.bf16.gmra.mxu0 %v1082
      %v1630 = vpop.f32.mrf.mxu0
      %v1631 = vadd.f32 %v1352, %v1630
      %v1632 = vpop.f32.mrf.mxu0
      %v1633 = vadd.f32 %v1354, %v1632
      %1634 = vmatmul.bf16.gmra.mxu0 %v1085
      %v1635 = vpop.f32.mrf.mxu0
      %v1636 = vadd.f32 %v1357, %v1635
      %v1637 = vpop.f32.mrf.mxu0
      %v1638 = vadd.f32 %v1359, %v1637
      %1639 = vmatmul.bf16.gmra.mxu0 %v1088
      %v1640 = vpop.f32.mrf.mxu0
      %v1641 = vadd.f32 %v1362, %v1640
      %v1642 = vpop.f32.mrf.mxu0
      %v1643 = vadd.f32 %v1364, %v1642
      %1644 = vmatmul.bf16.gmra.mxu0 %v1091
      %v1645 = vpop.f32.mrf.mxu0
      %v1646 = vadd.f32 %v1367, %v1645
      %v1647 = vpop.f32.mrf.mxu0
      %v1648 = vadd.f32 %v1369, %v1647
      %1649 = vmatmul.bf16.gmra.mxu0 %v1094
      %v1650 = vpop.f32.mrf.mxu0
      %v1651 = vadd.f32 %v1372, %v1650
      %v1652 = vpop.f32.mrf.mxu0
      %v1653 = vadd.f32 %v1374, %v1652
      %1654 = vmatmul.bf16.gmra.mxu0 %v1097
      %v1655 = vpop.f32.mrf.mxu0
      %v1656 = vadd.f32 %v1377, %v1655
      %v1657 = vpop.f32.mrf.mxu0
      %v1658 = vadd.f32 %v1379, %v1657
      %1659 = vmatmul.bf16.gmra.mxu0 %v1100
      %v1660 = vpop.f32.mrf.mxu0
      %v1661 = vadd.f32 %v1382, %v1660
      %v1662 = vpop.f32.mrf.mxu0
      %v1663 = vadd.f32 %v1384, %v1662
      %1664 = vmatmul.bf16.gmra.mxu0 %v1103
      %v1665 = vpop.f32.mrf.mxu0
      %v1666 = vadd.f32 %v1387, %v1665
      %v1667 = vpop.f32.mrf.mxu0
      %v1668 = vadd.f32 %v1389, %v1667
      %1669 = vdwg.mxu0
      %v1670 = vpack.c.bf16 %v1401, %v1401
      %v1671 = vpack.c.bf16 %v1403, %v1403
      %v1672 = vpack.c.bf16 %v1406, %v1406
      %v1673 = vpack.c.bf16 %v1408, %v1408
      %v1674 = vpack.c.bf16 %v1411, %v1411
      %v1675 = vpack.c.bf16 %v1413, %v1413
      %v1676 = vpack.c.bf16 %v1416, %v1416
      %v1677 = vpack.c.bf16 %v1418, %v1418
      %v1678 = vpack.c.bf16 %v1421, %v1421
      %v1679 = vpack.c.bf16 %v1423, %v1423
      %v1680 = vpack.c.bf16 %v1426, %v1426
      %v1681 = vpack.c.bf16 %v1428, %v1428
      %v1682 = vpack.c.bf16 %v1431, %v1431
      %v1683 = vpack.c.bf16 %v1433, %v1433
      %v1684 = vpack.c.bf16 %v1436, %v1436
      %v1685 = vpack.c.bf16 %v1438, %v1438
      %v1686 = vpack.c.bf16 %v1441, %v1441
      %v1687 = vpack.c.bf16 %v1443, %v1443
      %v1688 = vpack.c.bf16 %v1446, %v1446
      %v1689 = vpack.c.bf16 %v1448, %v1448
      %v1690 = vpack.c.bf16 %v1451, %v1451
      %v1691 = vpack.c.bf16 %v1453, %v1453
      %v1692 = vpack.c.bf16 %v1456, %v1456
      %v1693 = vpack.c.bf16 %v1458, %v1458
      %v1694 = vpack.c.bf16 %v1461, %v1461
      %v1695 = vpack.c.bf16 %v1463, %v1463
      %v1696 = vpack.c.bf16 %v1466, %v1466
      %v1697 = vpack.c.bf16 %v1468, %v1468
      %v1698 = vpack.c.bf16 %v1471, %v1471
      %v1699 = vpack.c.bf16 %v1473, %v1473
      %v1700 = vpack.c.bf16 %v1476, %v1476
      %v1701 = vpack.c.bf16 %v1478, %v1478
      %v1702 = vpack.c.bf16 %v1481, %v1481
      %v1703 = vpack.c.bf16 %v1483, %v1483
      %v1704 = vpack.c.bf16 %v1486, %v1486
      %v1705 = vpack.c.bf16 %v1488, %v1488
      %v1706 = vpack.c.bf16 %v1491, %v1491
      %v1707 = vpack.c.bf16 %v1493, %v1493
      %v1708 = vpack.c.bf16 %v1496, %v1496
      %v1709 = vpack.c.bf16 %v1498, %v1498
      %v1710 = vpack.c.bf16 %v1501, %v1501
      %v1711 = vpack.c.bf16 %v1503, %v1503
      %v1712 = vpack.c.bf16 %v1506, %v1506
      %v1713 = vpack.c.bf16 %v1508, %v1508
      %v1714 = vpack.c.bf16 %v1511, %v1511
      %v1715 = vpack.c.bf16 %v1513, %v1513
      %v1716 = vpack.c.bf16 %v1516, %v1516
      %v1717 = vpack.c.bf16 %v1518, %v1518
      %v1718 = vpack.c.bf16 %v1521, %v1521
      %v1719 = vpack.c.bf16 %v1523, %v1523
      %v1720 = vpack.c.bf16 %v1526, %v1526
      %v1721 = vpack.c.bf16 %v1528, %v1528
      %v1722 = vpack.c.bf16 %v1531, %v1531
      %v1723 = vpack.c.bf16 %v1533, %v1533
      %v1724 = vpack.c.bf16 %v1536, %v1536
      %v1725 = vpack.c.bf16 %v1538, %v1538
      %v1726 = vpack.c.bf16 %v1541, %v1541
      %v1727 = vpack.c.bf16 %v1543, %v1543
      %v1728 = vpack.c.bf16 %v1546, %v1546
      %v1729 = vpack.c.bf16 %v1548, %v1548
      %v1730 = vpack.c.bf16 %v1551, %v1551
      %v1731 = vpack.c.bf16 %v1553, %v1553
      %v1732 = vpack.c.bf16 %v1556, %v1556
      %v1733 = vpack.c.bf16 %v1558, %v1558
      %v1734 = vpack.c.bf16 %v1561, %v1561
      %v1735 = vpack.c.bf16 %v1563, %v1563
      %v1736 = vpack.c.bf16 %v1566, %v1566
      %v1737 = vpack.c.bf16 %v1568, %v1568
      %v1738 = vpack.c.bf16 %v1571, %v1571
      %v1739 = vpack.c.bf16 %v1573, %v1573
      %v1740 = vpack.c.bf16 %v1576, %v1576
      %v1741 = vpack.c.bf16 %v1578, %v1578
      %v1742 = vpack.c.bf16 %v1581, %v1581
      %v1743 = vpack.c.bf16 %v1583, %v1583
      %v1744 = vpack.c.bf16 %v1586, %v1586
      %v1745 = vpack.c.bf16 %v1588, %v1588
      %v1746 = vpack.c.bf16 %v1591, %v1591
      %v1747 = vpack.c.bf16 %v1593, %v1593
      %v1748 = vpack.c.bf16 %v1596, %v1596
      %v1749 = vpack.c.bf16 %v1598, %v1598
      %v1750 = vpack.c.bf16 %v1601, %v1601
      %v1751 = vpack.c.bf16 %v1603, %v1603
      %v1752 = vpack.c.bf16 %v1606, %v1606
      %v1753 = vpack.c.bf16 %v1608, %v1608
      %v1754 = vpack.c.bf16 %v1611, %v1611
      %v1755 = vpack.c.bf16 %v1613, %v1613
      %v1756 = vpack.c.bf16 %v1616, %v1616
      %v1757 = vpack.c.bf16 %v1618, %v1618
      %v1758 = vpack.c.bf16 %v1621, %v1621
      %v1759 = vpack.c.bf16 %v1623, %v1623
      %v1760 = vpack.c.bf16 %v1626, %v1626
      %v1761 = vpack.c.bf16 %v1628, %v1628
      %v1762 = vpack.c.bf16 %v1631, %v1631
      %v1763 = vpack.c.bf16 %v1633, %v1633
      %v1764 = vpack.c.bf16 %v1636, %v1636
      %v1765 = vpack.c.bf16 %v1638, %v1638
      %v1766 = vpack.c.bf16 %v1641, %v1641
      %v1767 = vpack.c.bf16 %v1643, %v1643
      %v1768 = vpack.c.bf16 %v1646, %v1646
      %v1769 = vpack.c.bf16 %v1648, %v1648
      %v1770 = vpack.c.bf16 %v1651, %v1651
      %v1771 = vpack.c.bf16 %v1653, %v1653
      %v1772 = vpack.c.bf16 %v1656, %v1656
      %v1773 = vpack.c.bf16 %v1658, %v1658
      %v1774 = vpack.c.bf16 %v1661, %v1661
      %v1775 = vpack.c.bf16 %v1663, %v1663
      %v1776 = vpack.c.bf16 %v1666, %v1666
      %v1777 = vpack.c.bf16 %v1668, %v1668
      %vm1778 = vcmask 60416
      %1779 = vst.msk [vmem:[%s265] sm:$0xf] %vm1778, %v1670
      %1780 = vst.msk [vmem:[%s265 + $0x4] sm:$0xf] %vm1778, %v1671
      %1781 = vst.msk [vmem:[%s265 + $0x8] sm:$0xf] %vm1778, %v1672
      %1782 = vst.msk [vmem:[%s265 + $0xc] sm:$0xf] %vm1778, %v1673
      %1783 = vst.msk [vmem:[%s265 + $0x10] sm:$0xf] %vm1778, %v1674
      %1784 = vst.msk [vmem:[%s265 + $0x14] sm:$0xf] %vm1778, %v1675
      %1785 = vst.msk [vmem:[%s265 + $0x18] sm:$0xf] %vm1778, %v1676
      %1786 = vst.msk [vmem:[%s265 + $0x1c] sm:$0xf] %vm1778, %v1677
      %1787 = vst.msk [vmem:[%s265 + $0x20] sm:$0xf] %vm1778, %v1678
      %1788 = vst.msk [vmem:[%s265 + $0x24] sm:$0xf] %vm1778, %v1679
      %1789 = vst.msk [vmem:[%s265 + $0x28] sm:$0xf] %vm1778, %v1680
      %1790 = vst.msk [vmem:[%s265 + $0x2c] sm:$0xf] %vm1778, %v1681
      %1791 = vst.msk [vmem:[%s265 + $0x30] sm:$0xf] %vm1778, %v1682
      %1792 = vst.msk [vmem:[%s265 + $0x34] sm:$0xf] %vm1778, %v1683
      %1793 = vst.msk [vmem:[%s265 + $0x38] sm:$0xf] %vm1778, %v1684
      %1794 = vst.msk [vmem:[%s265 + $0x3c] sm:$0xf] %vm1778, %v1685
      %1795 = vst.msk [vmem:[%s265 + $0x40] sm:$0xf] %vm1778, %v1686
      %1796 = vst.msk [vmem:[%s265 + $0x44] sm:$0xf] %vm1778, %v1687
      %1797 = vst.msk [vmem:[%s265 + $0x48] sm:$0xf] %vm1778, %v1688
      %1798 = vst.msk [vmem:[%s265 + $0x4c] sm:$0xf] %vm1778, %v1689
      %1799 = vst.msk [vmem:[%s265 + $0x50] sm:$0xf] %vm1778, %v1690
      %1800 = vst.msk [vmem:[%s265 + $0x54] sm:$0xf] %vm1778, %v1691
      %1801 = vst.msk [vmem:[%s265 + $0x58] sm:$0xf] %vm1778, %v1692
      %1802 = vst.msk [vmem:[%s265 + $0x5c] sm:$0xf] %vm1778, %v1693
      %1803 = vst.msk [vmem:[%s265 + $0x60] sm:$0xf] %vm1778, %v1694
      %1804 = vst.msk [vmem:[%s265 + $0x64] sm:$0xf] %vm1778, %v1695
      %1805 = vst.msk [vmem:[%s265 + $0x68] sm:$0xf] %vm1778, %v1696
      %1806 = vst.msk [vmem:[%s265 + $0x6c] sm:$0xf] %vm1778, %v1697
      %1807 = vst.msk [vmem:[%s265 + $0x70] sm:$0xf] %vm1778, %v1698
      %1808 = vst.msk [vmem:[%s265 + $0x74] sm:$0xf] %vm1778, %v1699
      %1809 = vst.msk [vmem:[%s265 + $0x78] sm:$0xf] %vm1778, %v1700
      %1810 = vst.msk [vmem:[%s265 + $0x7c] sm:$0xf] %vm1778, %v1701
      %1811 = vst.msk [vmem:[%s265 + $0x80] sm:$0xf] %vm1778, %v1702
      %1812 = vst.msk [vmem:[%s265 + $0x84] sm:$0xf] %vm1778, %v1703
      %1813 = vst.msk [vmem:[%s265 + $0x88] sm:$0xf] %vm1778, %v1704
      %1814 = vst.msk [vmem:[%s265 + $0x8c] sm:$0xf] %vm1778, %v1705
      %1815 = vst.msk [vmem:[%s265 + $0x90] sm:$0xf] %vm1778, %v1706
      %1816 = vst.msk [vmem:[%s265 + $0x94] sm:$0xf] %vm1778, %v1707
      %1817 = vst.msk [vmem:[%s265 + $0x98] sm:$0xf] %vm1778, %v1708
      %1818 = vst.msk [vmem:[%s265 + $0x9c] sm:$0xf] %vm1778, %v1709
      %1819 = vst.msk [vmem:[%s265 + $0xa0] sm:$0xf] %vm1778, %v1710
      %1820 = vst.msk [vmem:[%s265 + $0xa4] sm:$0xf] %vm1778, %v1711
      %1821 = vst.msk [vmem:[%s265 + $0xa8] sm:$0xf] %vm1778, %v1712
      %1822 = vst.msk [vmem:[%s265 + $0xac] sm:$0xf] %vm1778, %v1713
      %1823 = vst.msk [vmem:[%s265 + $0xb0] sm:$0xf] %vm1778, %v1714
      %1824 = vst.msk [vmem:[%s265 + $0xb4] sm:$0xf] %vm1778, %v1715
      %1825 = vst.msk [vmem:[%s265 + $0xb8] sm:$0xf] %vm1778, %v1716
      %1826 = vst.msk [vmem:[%s265 + $0xbc] sm:$0xf] %vm1778, %v1717
      %1827 = vst.msk [vmem:[%s265 + $0xc0] sm:$0xf] %vm1778, %v1718
      %1828 = vst.msk [vmem:[%s265 + $0xc4] sm:$0xf] %vm1778, %v1719
      %1829 = vst.msk [vmem:[%s265 + $0xc8] sm:$0xf] %vm1778, %v1720
      %1830 = vst.msk [vmem:[%s265 + $0xcc] sm:$0xf] %vm1778, %v1721
      %1831 = vst.msk [vmem:[%s265 + $0xd0] sm:$0xf] %vm1778, %v1722
      %1832 = vst.msk [vmem:[%s265 + $0xd4] sm:$0xf] %vm1778, %v1723
      %1833 = vst.msk [vmem:[%s265 + $0xd8] sm:$0xf] %vm1778, %v1724
      %1834 = vst.msk [vmem:[%s265 + $0xdc] sm:$0xf] %vm1778, %v1725
      %1835 = vst.msk [vmem:[%s265 + $0xe0] sm:$0xf] %vm1778, %v1726
      %1836 = vst.msk [vmem:[%s265 + $0xe4] sm:$0xf] %vm1778, %v1727
      %1837 = vst.msk [vmem:[%s265 + $0xe8] sm:$0xf] %vm1778, %v1728
      %1838 = vst.msk [vmem:[%s265 + $0xec] sm:$0xf] %vm1778, %v1729
      %1839 = vst.msk [vmem:[%s265 + $0xf0] sm:$0xf] %vm1778, %v1730
      %1840 = vst.msk [vmem:[%s265 + $0xf4] sm:$0xf] %vm1778, %v1731
      %1841 = vst.msk [vmem:[%s265 + $0xf8] sm:$0xf] %vm1778, %v1732
      %1842 = vst.msk [vmem:[%s265 + $0xfc] sm:$0xf] %vm1778, %v1733
      %1843 = vst.msk [vmem:[%s265 + $0x100] sm:$0xf] %vm1778, %v1734
      %1844 = vst.msk [vmem:[%s265 + $0x104] sm:$0xf] %vm1778, %v1735
      %1845 = vst.msk [vmem:[%s265 + $0x108] sm:$0xf] %vm1778, %v1736
      %1846 = vst.msk [vmem:[%s265 + $0x10c] sm:$0xf] %vm1778, %v1737
      %1847 = vst.msk [vmem:[%s265 + $0x110] sm:$0xf] %vm1778, %v1738
      %1848 = vst.msk [vmem:[%s265 + $0x114] sm:$0xf] %vm1778, %v1739
      %1849 = vst.msk [vmem:[%s265 + $0x118] sm:$0xf] %vm1778, %v1740
      %1850 = vst.msk [vmem:[%s265 + $0x11c] sm:$0xf] %vm1778, %v1741
      %1851 = vst.msk [vmem:[%s265 + $0x120] sm:$0xf] %vm1778, %v1742
      %1852 = vst.msk [vmem:[%s265 + $0x124] sm:$0xf] %vm1778, %v1743
      %1853 = vst.msk [vmem:[%s265 + $0x128] sm:$0xf] %vm1778, %v1744
      %1854 = vst.msk [vmem:[%s265 + $0x12c] sm:$0xf] %vm1778, %v1745
      %1855 = vst.msk [vmem:[%s265 + $0x130] sm:$0xf] %vm1778, %v1746
      %1856 = vst.msk [vmem:[%s265 + $0x134] sm:$0xf] %vm1778, %v1747
      %1857 = vst.msk [vmem:[%s265 + $0x138] sm:$0xf] %vm1778, %v1748
      %1858 = vst.msk [vmem:[%s265 + $0x13c] sm:$0xf] %vm1778, %v1749
      %1859 = vst.msk [vmem:[%s265 + $0x140] sm:$0xf] %vm1778, %v1750
      %1860 = vst.msk [vmem:[%s265 + $0x144] sm:$0xf] %vm1778, %v1751
      %1861 = vst.msk [vmem:[%s265 + $0x148] sm:$0xf] %vm1778, %v1752
      %1862 = vst.msk [vmem:[%s265 + $0x14c] sm:$0xf] %vm1778, %v1753
      %1863 = vst.msk [vmem:[%s265 + $0x150] sm:$0xf] %vm1778, %v1754
      %1864 = vst.msk [vmem:[%s265 + $0x154] sm:$0xf] %vm1778, %v1755
      %1865 = vst.msk [vmem:[%s265 + $0x158] sm:$0xf] %vm1778, %v1756
      %1866 = vst.msk [vmem:[%s265 + $0x15c] sm:$0xf] %vm1778, %v1757
      %1867 = vst.msk [vmem:[%s265 + $0x160] sm:$0xf] %vm1778, %v1758
      %1868 = vst.msk [vmem:[%s265 + $0x164] sm:$0xf] %vm1778, %v1759
      %1869 = vst.msk [vmem:[%s265 + $0x168] sm:$0xf] %vm1778, %v1760
      %1870 = vst.msk [vmem:[%s265 + $0x16c] sm:$0xf] %vm1778, %v1761
      %1871 = vst.msk [vmem:[%s265 + $0x170] sm:$0xf] %vm1778, %v1762
      %1872 = vst.msk [vmem:[%s265 + $0x174] sm:$0xf] %vm1778, %v1763
      %1873 = vst.msk [vmem:[%s265 + $0x178] sm:$0xf] %vm1778, %v1764
      %1874 = vst.msk [vmem:[%s265 + $0x17c] sm:$0xf] %vm1778, %v1765
      %1875 = vst.msk [vmem:[%s265 + $0x180] sm:$0xf] %vm1778, %v1766
      %1876 = vst.msk [vmem:[%s265 + $0x184] sm:$0xf] %vm1778, %v1767
      %1877 = vst.msk [vmem:[%s265 + $0x188] sm:$0xf] %vm1778, %v1768
      %1878 = vst.msk [vmem:[%s265 + $0x18c] sm:$0xf] %vm1778, %v1769
      %1879 = vst.msk [vmem:[%s265 + $0x190] sm:$0xf] %vm1778, %v1770
      %1880 = vst.msk [vmem:[%s265 + $0x194] sm:$0xf] %vm1778, %v1771
      %1881 = vst.msk [vmem:[%s265 + $0x198] sm:$0xf] %vm1778, %v1772
      %1882 = vst.msk [vmem:[%s265 + $0x19c] sm:$0xf] %vm1778, %v1773
      %1883 = vst.msk [vmem:[%s265 + $0x1a0] sm:$0xf] %vm1778, %v1774
      %1884 = vst.msk [vmem:[%s265 + $0x1a4] sm:$0xf] %vm1778, %v1775
      %1885 = vst.msk [vmem:[%s265 + $0x1a8] sm:$0xf] %vm1778, %v1776
      %1886 = vst.msk [vmem:[%s265 + $0x1ac] sm:$0xf] %vm1778, %v1777
      %s1887 = smul.u32 108, %s19
      %p1888 = scmp.lt.s32.totalorder %s1887, 11663
      %s1889 = scalar_select %p1888, %s1887, 11663
      %p1890 = scmp.lt.s32.totalorder %s20, 0
      %s1891 = scalar_select %p1890, %s20, 0
      %s1892 = sadd.s32 %s1891, %s1889
      %s1893 = smul.addr %s1892, 4
      %s1894 = scalar_lea.vmem %s3, %s1893
      // Predicated region
      $region33: #{pallas_matmul.1} parent=31 // pred_check
        %p1895 = pneg %p135
      $region34: #{pallas_matmul.1} parent=31 // pred_check_branch
        %1897 = sbr.rel (%p1895) target = $region36
      $region35: #{pallas_matmul.1} parent=31 // pred_region
        %s1898 = smul.u32 108, %s19
      $region36: #{pallas_matmul.1} parent=31 // pred_fallthru
        _
    $region32: #{pallas_matmul.1} parent=5 // pred_fallthru
      _
    %p1899 = scmp.le.s32.totalorder 2, %s9
    // Predicated region
    $region37: #{pallas_matmul.1} parent=5 // pred_check
      %p1900 = pneg %p1899
    $region38: #{pallas_matmul.1} parent=5 // pred_check_branch
      %1902 = sbr.rel (%p1900) target = $region40
    $region39: #{pallas_matmul.1} parent=5 // pred_region
      %s1903 = ssub.s32 %s9, 2
      // Predicated region
      $region41: #{pallas_matmul.1} parent=39 // pred_check
        %p1904 = pneg %p141
      $region42: #{pallas_matmul.1} parent=39 // pred_check_branch
        %1906 = sbr.rel (%p1904) target = $region44
      $region43: #{pallas_matmul.1} parent=39 // pred_region
        %s1907 = smul.u32 108, %s22
        %p1908 = scmp.lt.s32.totalorder %s1907, 11663
        %s1909 = scalar_select %p1908, %s1907, 11663
        %p1910 = scmp.lt.s32.totalorder %s23, 0
        %s1911 = scalar_select %p1910, %s23, 0
        %s1912 = sadd.s32 %s1911, %s1909
        %s1913 = smul.addr %s1912, 4
        %s1914 = scalar_lea.vmem %s3, %s1913
      $region44: #{pallas_matmul.1} parent=39 // pred_fallthru
        _
    $region40: #{pallas_matmul.1} parent=5 // pred_fallthru
      _
  $region6: #{pallas_matmul.1} parent=0 // loop_footer
    %s13 = sadd.s32 1, %s9
  $region7: #{pallas_matmul.1} parent=0 // loop_footer_branch
    %8 = sbr.rel target = $region3
  $region8: #{pallas_matmul.1} parent=0 // loop_exit
    _

</llo_original>
